<compile_context>
chip_gen: v6e
topology: v6e:2x2x1
jax: 0.10.0
libtpu: 0.0.40
codegen_flags: <defaults>
</compile_context>

<pallas_src>
import math

import jax
import jax.numpy as jnp
from jax.experimental import pallas as pl
from jax.experimental.pallas import tpu as pltpu


# ---------------------------------------------------------------------------
# sampling templates (deterministic "buffers" from MutexLoss.__init__)
# ---------------------------------------------------------------------------
def sample_boundary(step=2):
    a = jnp.linspace(0.0, 1.0, 2)
    b = jnp.linspace(0.0, 1.0, step)
    g1 = jnp.stack(jnp.meshgrid(a, b, indexing="ij"), axis=-1).reshape(-1, 2)
    g2 = jnp.stack(jnp.meshgrid(b, a, indexing="ij"), axis=-1).reshape(-1, 2)
    return jnp.concatenate([g1, g2], axis=0)            # [4*step, 2]


def sample_fragment(step=2):
    a = jnp.linspace(0.0, 1.0, step)
    return jnp.stack(jnp.meshgrid(a, a, indexing="ij"), axis=-1).reshape(-1, 2)  # [step^2, 2]


# ---------------------------------------------------------------------------
# Pallas kernel: the whole mutex loss in a single un-gridded invocation
# ---------------------------------------------------------------------------
def _make_mutex_kernel(B, FP, BP):
    inv_norm = 1.0 / float(B * FP - B)

    def kernel(frag_ref, bnd_ref, boxes_ref, out_ref):
        # all boxes' boundary points, lane-dense: lanes [j*BP:(j+1)*BP] = box j
        bx = bnd_ref[0]                                   # [1, B*BP]
        by = bnd_ref[1]                                   # [1, B*BP]

        acc = jnp.zeros((FP, 1), jnp.float32)
        for i in range(B):                                # fragment-owner box (static)
            fx = frag_ref[i, 0]                           # [FP, 1]  x of box-i fragments
            fy = frag_ref[i, 1]                           # [FP, 1]  y of box-i fragments

            # squared-distance tile: fragment rows (sublanes) x packed boundary lanes
            d2 = jnp.square(fx - bx) + jnp.square(fy - by)        # [FP, B*BP]

            for j in range(B):                            # target box (static)
                if j == i:
                    continue                              # diagonal is zeroed in the reference
                # fragment_box_distance: min over box j's BP boundary points
                dmin = jnp.min(d2[:, j * BP:(j + 1) * BP],
                               axis=1, keepdims=True)      # [FP, 1]
                # 1 - fragment_outside_box: inside-box-j indicator (scalar bounds from SMEM)
                x0 = boxes_ref[4 * j + 0]
                y0 = boxes_ref[4 * j + 1]
                x1 = boxes_ref[4 * j + 2]
                y1 = boxes_ref[4 * j + 3]
                inside = ((fx >= x0) & (fy >= y0) &
                          (fx <= x1) & (fy <= y1)).astype(jnp.float32)  # [FP, 1]
                acc = acc + dmin * inside

        # normalized scalar, broadcast to one lane-dense (1, 128) store
        loss = jnp.sum(acc) * inv_norm
        out_ref[...] = jnp.broadcast_to(loss, out_ref.shape).astype(out_ref.dtype)

    return kernel


def mutex_loss_pallas(boxes, frag_t, bnd_t):
    boxes = boxes.astype(jnp.float32)
    B = boxes.shape[0]
    FP = frag_t.shape[0]
    BP = bnd_t.shape[0]

    # cheap per-box affine setup + packing (wrapper glue, O(B*(FP+BP)))
    xy = boxes[:, :2]
    wh = boxes[:, 2:] - boxes[:, :2]
    fragments = frag_t[None, :, :] * wh[:, None, :] + xy[:, None, :]    # [B, FP, 2]
    box_points = bnd_t[None, :, :] * wh[:, None, :] + xy[:, None, :]    # [B, BP, 2]

    # fragments packed as [B, 2, FP, 1]: x / y planes, FP on sublanes
    frag_pack = jnp.transpose(fragments, (0, 2, 1))[..., None]          # [B, 2, FP, 1]
    # boundary of ALL boxes packed lane-dense: [2, 1, B*BP]
    bnd_pack = jnp.transpose(box_points, (2, 0, 1)).reshape(2, 1, B * BP)
    # box bounds flattened to 1-D for SMEM scalar reads (avoids 2-D SMEM padding)
    boxes_flat = boxes.reshape(-1)                                      # [4*B]

    out = pl.pallas_call(
        _make_mutex_kernel(B, FP, BP),
        out_shape=jax.ShapeDtypeStruct((1, 128), jnp.float32),
        in_specs=[
            pl.BlockSpec(memory_space=pltpu.MemorySpace.VMEM),
            pl.BlockSpec(memory_space=pltpu.MemorySpace.VMEM),
            pl.BlockSpec(memory_space=pltpu.MemorySpace.SMEM),
        ],
        out_specs=pl.BlockSpec(memory_space=pltpu.MemorySpace.VMEM),
    )(frag_pack, bnd_pack, boxes_flat)

    return out[0, 0]


def mutex_loss_forward(pred, frag_t, bnd_t):
    # MutexLoss.forward: losses = [_mutex_loss(pred)]; return mean(stack(losses))
    losses = [mutex_loss_pallas(pred, frag_t, bnd_t)]
    return jnp.mean(jnp.stack(losses))


# ---------------------------------------------------------------------------
# pure-JAX reference (mirrors the PyTorch forward exactly)
# ---------------------------------------------------------------------------
def mutex_loss_ref(boxes, frag_t, bnd_t):
    B = boxes.shape[0]
    FP = frag_t.shape[0]
    wh = boxes[:, 2:] - boxes[:, :2]
    fragments = frag_t[None] * wh[:, None, :] + boxes[:, None, :2]      # [B, FP, 2]
    box_points = bnd_t[None] * wh[:, None, :] + boxes[:, None, :2]      # [B, BP, 2]

    diff = jnp.concatenate(
        [fragments[:, :, None, :] - boxes[None, None, :, :2],
         boxes[None, None, :, 2:] - fragments[:, :, None, :]], axis=-1)  # [B,FP,B,4]
    f_in_box = 1.0 - ((diff >= 0).sum(-1) != 4).astype(jnp.float32)
    idx = jnp.arange(B)
    f_in_box = f_in_box.at[idx, :, idx].set(0.0)

    d2 = ((fragments[:, :, None, None, :] -
           box_points[None, None, :, :, :]) ** 2).sum(-1)               # [B,FP,B,BP]
    f_b_dist = d2.min(-1)
    return (f_b_dist * f_in_box).sum() / (B * FP - B)


# ---------------------------------------------------------------------------
if __name__ == "__main__":
    # small nsample so shapes stay modest: bstep=16, fstep=8 -> BP=64, FP=64
    nsample = 64
    bstep = round(nsample / 4)
    fstep = round(math.sqrt(nsample))
    BP = bstep * 4
    FP = fstep * fstep

    bnd_t = sample_boundary(step=bstep).astype(jnp.float32)   # [BP, 2]
    frag_t = sample_fragment(step=fstep).astype(jnp.float32)  # [FP, 2]

    # deterministic overlapping boxes [B, 4] = (x0, y0, x1, y1)
    B = 4
    key = jax.random.PRNGKey(0)
    k1, k2 = jax.random.split(key)
    xy0 = jax.random.uniform(k1, (B, 2), minval=0.0, maxval=1.0)
    wh = jax.random.uniform(k2, (B, 2), minval=0.3, maxval=1.2)
    boxes = jnp.concatenate([xy0, xy0 + wh], axis=-1).astype(jnp.float32)

    loss = jax.jit(mutex_loss_forward)(boxes, frag_t, bnd_t)
    loss = jax.block_until_ready(loss)

    ref = mutex_loss_ref(boxes, frag_t, bnd_t)
    assert jnp.allclose(loss, ref, rtol=1e-5, atol=1e-5), (float(loss), float(ref))

    print("KERNEL_OK")
</pallas_src>

<mosaic_0001>
module attributes {stable_mosaic.version = 11 : i64} {
  func.func @kernel(%arg0: memref<4x2x64x1xf32, #tpu.memory_space<vmem>>, %arg1: memref<2x1x256xf32, #tpu.memory_space<vmem>>, %arg2: memref<16xf32, #tpu.memory_space<smem>>, %arg3: memref<1x128xf32, #tpu.memory_space<vmem>>) attributes {dimension_semantics = [], scalar_prefetch = 0 : i64, scratch_operands = 0 : i64, tpu.core_type = #tpu.core_type<tc>} {
    %c0 = arith.constant 0 : index
    %c0_0 = arith.constant 0 : index
    %c0_1 = arith.constant 0 : index
    %0 = vector.load %arg1[%c0, %c0_0, %c0_1] : memref<2x1x256xf32, #tpu.memory_space<vmem>>, vector<1x1x256xf32>
    %1 = vector.shape_cast %0 : vector<1x1x256xf32> to vector<1x256xf32>
    %c1 = arith.constant 1 : index
    %c0_2 = arith.constant 0 : index
    %c0_3 = arith.constant 0 : index
    %2 = vector.load %arg1[%c1, %c0_2, %c0_3] : memref<2x1x256xf32, #tpu.memory_space<vmem>>, vector<1x1x256xf32>
    %3 = vector.shape_cast %2 : vector<1x1x256xf32> to vector<1x256xf32>
    %cst = arith.constant 0.000000e+00 : f32
    %4 = vector.broadcast %cst : f32 to vector<64x1xf32>
    %c0_4 = arith.constant 0 : index
    %c0_5 = arith.constant 0 : index
    %c0_6 = arith.constant 0 : index
    %c0_7 = arith.constant 0 : index
    %5 = vector.load %arg0[%c0_4, %c0_5, %c0_6, %c0_7] : memref<4x2x64x1xf32, #tpu.memory_space<vmem>>, vector<1x1x64x1xf32>
    %6 = vector.shape_cast %5 : vector<1x1x64x1xf32> to vector<64x1xf32>
    %c0_8 = arith.constant 0 : index
    %c1_9 = arith.constant 1 : index
    %c0_10 = arith.constant 0 : index
    %c0_11 = arith.constant 0 : index
    %7 = vector.load %arg0[%c0_8, %c1_9, %c0_10, %c0_11] : memref<4x2x64x1xf32, #tpu.memory_space<vmem>>, vector<1x1x64x1xf32>
    %8 = vector.shape_cast %7 : vector<1x1x64x1xf32> to vector<64x1xf32>
    %9 = vector.broadcast %6 : vector<64x1xf32> to vector<64x256xf32>
    %10 = vector.broadcast %1 : vector<1x256xf32> to vector<64x256xf32>
    %11 = arith.subf %9, %10 : vector<64x256xf32>
    %12 = arith.mulf %11, %11 : vector<64x256xf32>
    %13 = vector.broadcast %8 : vector<64x1xf32> to vector<64x256xf32>
    %14 = vector.broadcast %3 : vector<1x256xf32> to vector<64x256xf32>
    %15 = arith.subf %13, %14 : vector<64x256xf32>
    %16 = arith.mulf %15, %15 : vector<64x256xf32>
    %17 = arith.addf %12, %16 : vector<64x256xf32>
    %18 = vector.extract_strided_slice %17 {offsets = [0, 64], sizes = [64, 64], strides = [1, 1]} : vector<64x256xf32> to vector<64x64xf32>
    %cst_12 = arith.constant dense<0x7F800000> : vector<64xf32>
    %19 = vector.multi_reduction <minimumf>, %18, %cst_12 [1] : vector<64x64xf32> to vector<64xf32>
    %20 = vector.shape_cast %19 : vector<64xf32> to vector<64x1xf32>
    %c4 = arith.constant 4 : index
    %21 = memref.load %arg2[%c4] : memref<16xf32, #tpu.memory_space<smem>>
    %c5 = arith.constant 5 : index
    %22 = memref.load %arg2[%c5] : memref<16xf32, #tpu.memory_space<smem>>
    %c6 = arith.constant 6 : index
    %23 = memref.load %arg2[%c6] : memref<16xf32, #tpu.memory_space<smem>>
    %c7 = arith.constant 7 : index
    %24 = memref.load %arg2[%c7] : memref<16xf32, #tpu.memory_space<smem>>
    %25 = vector.broadcast %21 : f32 to vector<64x1xf32>
    %26 = arith.cmpf oge, %6, %25 : vector<64x1xf32>
    %27 = vector.broadcast %22 : f32 to vector<64x1xf32>
    %28 = arith.cmpf oge, %8, %27 : vector<64x1xf32>
    %29 = arith.andi %26, %28 : vector<64x1xi1>
    %30 = vector.broadcast %23 : f32 to vector<64x1xf32>
    %31 = arith.cmpf ole, %6, %30 : vector<64x1xf32>
    %32 = arith.andi %29, %31 : vector<64x1xi1>
    %33 = vector.broadcast %24 : f32 to vector<64x1xf32>
    %34 = arith.cmpf ole, %8, %33 : vector<64x1xf32>
    %35 = arith.andi %32, %34 : vector<64x1xi1>
    %36 = arith.extui %35 : vector<64x1xi1> to vector<64x1xi32>
    %37 = arith.sitofp %36 : vector<64x1xi32> to vector<64x1xf32>
    %38 = arith.mulf %20, %37 : vector<64x1xf32>
    %39 = arith.addf %4, %38 : vector<64x1xf32>
    %40 = vector.extract_strided_slice %17 {offsets = [0, 128], sizes = [64, 64], strides = [1, 1]} : vector<64x256xf32> to vector<64x64xf32>
    %cst_13 = arith.constant dense<0x7F800000> : vector<64xf32>
    %41 = vector.multi_reduction <minimumf>, %40, %cst_13 [1] : vector<64x64xf32> to vector<64xf32>
    %42 = vector.shape_cast %41 : vector<64xf32> to vector<64x1xf32>
    %c8 = arith.constant 8 : index
    %43 = memref.load %arg2[%c8] : memref<16xf32, #tpu.memory_space<smem>>
    %c9 = arith.constant 9 : index
    %44 = memref.load %arg2[%c9] : memref<16xf32, #tpu.memory_space<smem>>
    %c10 = arith.constant 10 : index
    %45 = memref.load %arg2[%c10] : memref<16xf32, #tpu.memory_space<smem>>
    %c11 = arith.constant 11 : index
    %46 = memref.load %arg2[%c11] : memref<16xf32, #tpu.memory_space<smem>>
    %47 = vector.broadcast %43 : f32 to vector<64x1xf32>
    %48 = arith.cmpf oge, %6, %47 : vector<64x1xf32>
    %49 = vector.broadcast %44 : f32 to vector<64x1xf32>
    %50 = arith.cmpf oge, %8, %49 : vector<64x1xf32>
    %51 = arith.andi %48, %50 : vector<64x1xi1>
    %52 = vector.broadcast %45 : f32 to vector<64x1xf32>
    %53 = arith.cmpf ole, %6, %52 : vector<64x1xf32>
    %54 = arith.andi %51, %53 : vector<64x1xi1>
    %55 = vector.broadcast %46 : f32 to vector<64x1xf32>
    %56 = arith.cmpf ole, %8, %55 : vector<64x1xf32>
    %57 = arith.andi %54, %56 : vector<64x1xi1>
    %58 = arith.extui %57 : vector<64x1xi1> to vector<64x1xi32>
    %59 = arith.sitofp %58 : vector<64x1xi32> to vector<64x1xf32>
    %60 = arith.mulf %42, %59 : vector<64x1xf32>
    %61 = arith.addf %39, %60 : vector<64x1xf32>
    %62 = vector.extract_strided_slice %17 {offsets = [0, 192], sizes = [64, 64], strides = [1, 1]} : vector<64x256xf32> to vector<64x64xf32>
    %cst_14 = arith.constant dense<0x7F800000> : vector<64xf32>
    %63 = vector.multi_reduction <minimumf>, %62, %cst_14 [1] : vector<64x64xf32> to vector<64xf32>
    %64 = vector.shape_cast %63 : vector<64xf32> to vector<64x1xf32>
    %c12 = arith.constant 12 : index
    %65 = memref.load %arg2[%c12] : memref<16xf32, #tpu.memory_space<smem>>
    %c13 = arith.constant 13 : index
    %66 = memref.load %arg2[%c13] : memref<16xf32, #tpu.memory_space<smem>>
    %c14 = arith.constant 14 : index
    %67 = memref.load %arg2[%c14] : memref<16xf32, #tpu.memory_space<smem>>
    %c15 = arith.constant 15 : index
    %68 = memref.load %arg2[%c15] : memref<16xf32, #tpu.memory_space<smem>>
    %69 = vector.broadcast %65 : f32 to vector<64x1xf32>
    %70 = arith.cmpf oge, %6, %69 : vector<64x1xf32>
    %71 = vector.broadcast %66 : f32 to vector<64x1xf32>
    %72 = arith.cmpf oge, %8, %71 : vector<64x1xf32>
    %73 = arith.andi %70, %72 : vector<64x1xi1>
    %74 = vector.broadcast %67 : f32 to vector<64x1xf32>
    %75 = arith.cmpf ole, %6, %74 : vector<64x1xf32>
    %76 = arith.andi %73, %75 : vector<64x1xi1>
    %77 = vector.broadcast %68 : f32 to vector<64x1xf32>
    %78 = arith.cmpf ole, %8, %77 : vector<64x1xf32>
    %79 = arith.andi %76, %78 : vector<64x1xi1>
    %80 = arith.extui %79 : vector<64x1xi1> to vector<64x1xi32>
    %81 = arith.sitofp %80 : vector<64x1xi32> to vector<64x1xf32>
    %82 = arith.mulf %64, %81 : vector<64x1xf32>
    %83 = arith.addf %61, %82 : vector<64x1xf32>
    %c1_15 = arith.constant 1 : index
    %c0_16 = arith.constant 0 : index
    %c0_17 = arith.constant 0 : index
    %c0_18 = arith.constant 0 : index
    %84 = vector.load %arg0[%c1_15, %c0_16, %c0_17, %c0_18] : memref<4x2x64x1xf32, #tpu.memory_space<vmem>>, vector<1x1x64x1xf32>
    %85 = vector.shape_cast %84 : vector<1x1x64x1xf32> to vector<64x1xf32>
    %c1_19 = arith.constant 1 : index
    %c1_20 = arith.constant 1 : index
    %c0_21 = arith.constant 0 : index
    %c0_22 = arith.constant 0 : index
    %86 = vector.load %arg0[%c1_19, %c1_20, %c0_21, %c0_22] : memref<4x2x64x1xf32, #tpu.memory_space<vmem>>, vector<1x1x64x1xf32>
    %87 = vector.shape_cast %86 : vector<1x1x64x1xf32> to vector<64x1xf32>
    %88 = vector.broadcast %85 : vector<64x1xf32> to vector<64x256xf32>
    %89 = vector.broadcast %1 : vector<1x256xf32> to vector<64x256xf32>
    %90 = arith.subf %88, %89 : vector<64x256xf32>
    %91 = arith.mulf %90, %90 : vector<64x256xf32>
    %92 = vector.broadcast %87 : vector<64x1xf32> to vector<64x256xf32>
    %93 = vector.broadcast %3 : vector<1x256xf32> to vector<64x256xf32>
    %94 = arith.subf %92, %93 : vector<64x256xf32>
    %95 = arith.mulf %94, %94 : vector<64x256xf32>
    %96 = arith.addf %91, %95 : vector<64x256xf32>
    %97 = vector.extract_strided_slice %96 {offsets = [0, 0], sizes = [64, 64], strides = [1, 1]} : vector<64x256xf32> to vector<64x64xf32>
    %cst_23 = arith.constant dense<0x7F800000> : vector<64xf32>
    %98 = vector.multi_reduction <minimumf>, %97, %cst_23 [1] : vector<64x64xf32> to vector<64xf32>
    %99 = vector.shape_cast %98 : vector<64xf32> to vector<64x1xf32>
    %c0_24 = arith.constant 0 : index
    %100 = memref.load %arg2[%c0_24] : memref<16xf32, #tpu.memory_space<smem>>
    %c1_25 = arith.constant 1 : index
    %101 = memref.load %arg2[%c1_25] : memref<16xf32, #tpu.memory_space<smem>>
    %c2 = arith.constant 2 : index
    %102 = memref.load %arg2[%c2] : memref<16xf32, #tpu.memory_space<smem>>
    %c3 = arith.constant 3 : index
    %103 = memref.load %arg2[%c3] : memref<16xf32, #tpu.memory_space<smem>>
    %104 = vector.broadcast %100 : f32 to vector<64x1xf32>
    %105 = arith.cmpf oge, %85, %104 : vector<64x1xf32>
    %106 = vector.broadcast %101 : f32 to vector<64x1xf32>
    %107 = arith.cmpf oge, %87, %106 : vector<64x1xf32>
    %108 = arith.andi %105, %107 : vector<64x1xi1>
    %109 = vector.broadcast %102 : f32 to vector<64x1xf32>
    %110 = arith.cmpf ole, %85, %109 : vector<64x1xf32>
    %111 = arith.andi %108, %110 : vector<64x1xi1>
    %112 = vector.broadcast %103 : f32 to vector<64x1xf32>
    %113 = arith.cmpf ole, %87, %112 : vector<64x1xf32>
    %114 = arith.andi %111, %113 : vector<64x1xi1>
    %115 = arith.extui %114 : vector<64x1xi1> to vector<64x1xi32>
    %116 = arith.sitofp %115 : vector<64x1xi32> to vector<64x1xf32>
    %117 = arith.mulf %99, %116 : vector<64x1xf32>
    %118 = arith.addf %83, %117 : vector<64x1xf32>
    %119 = vector.extract_strided_slice %96 {offsets = [0, 128], sizes = [64, 64], strides = [1, 1]} : vector<64x256xf32> to vector<64x64xf32>
    %cst_26 = arith.constant dense<0x7F800000> : vector<64xf32>
    %120 = vector.multi_reduction <minimumf>, %119, %cst_26 [1] : vector<64x64xf32> to vector<64xf32>
    %121 = vector.shape_cast %120 : vector<64xf32> to vector<64x1xf32>
    %c8_27 = arith.constant 8 : index
    %122 = memref.load %arg2[%c8_27] : memref<16xf32, #tpu.memory_space<smem>>
    %c9_28 = arith.constant 9 : index
    %123 = memref.load %arg2[%c9_28] : memref<16xf32, #tpu.memory_space<smem>>
    %c10_29 = arith.constant 10 : index
    %124 = memref.load %arg2[%c10_29] : memref<16xf32, #tpu.memory_space<smem>>
    %c11_30 = arith.constant 11 : index
    %125 = memref.load %arg2[%c11_30] : memref<16xf32, #tpu.memory_space<smem>>
    %126 = vector.broadcast %122 : f32 to vector<64x1xf32>
    %127 = arith.cmpf oge, %85, %126 : vector<64x1xf32>
    %128 = vector.broadcast %123 : f32 to vector<64x1xf32>
    %129 = arith.cmpf oge, %87, %128 : vector<64x1xf32>
    %130 = arith.andi %127, %129 : vector<64x1xi1>
    %131 = vector.broadcast %124 : f32 to vector<64x1xf32>
    %132 = arith.cmpf ole, %85, %131 : vector<64x1xf32>
    %133 = arith.andi %130, %132 : vector<64x1xi1>
    %134 = vector.broadcast %125 : f32 to vector<64x1xf32>
    %135 = arith.cmpf ole, %87, %134 : vector<64x1xf32>
    %136 = arith.andi %133, %135 : vector<64x1xi1>
    %137 = arith.extui %136 : vector<64x1xi1> to vector<64x1xi32>
    %138 = arith.sitofp %137 : vector<64x1xi32> to vector<64x1xf32>
    %139 = arith.mulf %121, %138 : vector<64x1xf32>
    %140 = arith.addf %118, %139 : vector<64x1xf32>
    %141 = vector.extract_strided_slice %96 {offsets = [0, 192], sizes = [64, 64], strides = [1, 1]} : vector<64x256xf32> to vector<64x64xf32>
    %cst_31 = arith.constant dense<0x7F800000> : vector<64xf32>
    %142 = vector.multi_reduction <minimumf>, %141, %cst_31 [1] : vector<64x64xf32> to vector<64xf32>
    %143 = vector.shape_cast %142 : vector<64xf32> to vector<64x1xf32>
    %c12_32 = arith.constant 12 : index
    %144 = memref.load %arg2[%c12_32] : memref<16xf32, #tpu.memory_space<smem>>
    %c13_33 = arith.constant 13 : index
    %145 = memref.load %arg2[%c13_33] : memref<16xf32, #tpu.memory_space<smem>>
    %c14_34 = arith.constant 14 : index
    %146 = memref.load %arg2[%c14_34] : memref<16xf32, #tpu.memory_space<smem>>
    %c15_35 = arith.constant 15 : index
    %147 = memref.load %arg2[%c15_35] : memref<16xf32, #tpu.memory_space<smem>>
    %148 = vector.broadcast %144 : f32 to vector<64x1xf32>
    %149 = arith.cmpf oge, %85, %148 : vector<64x1xf32>
    %150 = vector.broadcast %145 : f32 to vector<64x1xf32>
    %151 = arith.cmpf oge, %87, %150 : vector<64x1xf32>
    %152 = arith.andi %149, %151 : vector<64x1xi1>
    %153 = vector.broadcast %146 : f32 to vector<64x1xf32>
    %154 = arith.cmpf ole, %85, %153 : vector<64x1xf32>
    %155 = arith.andi %152, %154 : vector<64x1xi1>
    %156 = vector.broadcast %147 : f32 to vector<64x1xf32>
    %157 = arith.cmpf ole, %87, %156 : vector<64x1xf32>
    %158 = arith.andi %155, %157 : vector<64x1xi1>
    %159 = arith.extui %158 : vector<64x1xi1> to vector<64x1xi32>
    %160 = arith.sitofp %159 : vector<64x1xi32> to vector<64x1xf32>
    %161 = arith.mulf %143, %160 : vector<64x1xf32>
    %162 = arith.addf %140, %161 : vector<64x1xf32>
    %c2_36 = arith.constant 2 : index
    %c0_37 = arith.constant 0 : index
    %c0_38 = arith.constant 0 : index
    %c0_39 = arith.constant 0 : index
    %163 = vector.load %arg0[%c2_36, %c0_37, %c0_38, %c0_39] : memref<4x2x64x1xf32, #tpu.memory_space<vmem>>, vector<1x1x64x1xf32>
    %164 = vector.shape_cast %163 : vector<1x1x64x1xf32> to vector<64x1xf32>
    %c2_40 = arith.constant 2 : index
    %c1_41 = arith.constant 1 : index
    %c0_42 = arith.constant 0 : index
    %c0_43 = arith.constant 0 : index
    %165 = vector.load %arg0[%c2_40, %c1_41, %c0_42, %c0_43] : memref<4x2x64x1xf32, #tpu.memory_space<vmem>>, vector<1x1x64x1xf32>
    %166 = vector.shape_cast %165 : vector<1x1x64x1xf32> to vector<64x1xf32>
    %167 = vector.broadcast %164 : vector<64x1xf32> to vector<64x256xf32>
    %168 = vector.broadcast %1 : vector<1x256xf32> to vector<64x256xf32>
    %169 = arith.subf %167, %168 : vector<64x256xf32>
    %170 = arith.mulf %169, %169 : vector<64x256xf32>
    %171 = vector.broadcast %166 : vector<64x1xf32> to vector<64x256xf32>
    %172 = vector.broadcast %3 : vector<1x256xf32> to vector<64x256xf32>
    %173 = arith.subf %171, %172 : vector<64x256xf32>
    %174 = arith.mulf %173, %173 : vector<64x256xf32>
    %175 = arith.addf %170, %174 : vector<64x256xf32>
    %176 = vector.extract_strided_slice %175 {offsets = [0, 0], sizes = [64, 64], strides = [1, 1]} : vector<64x256xf32> to vector<64x64xf32>
    %cst_44 = arith.constant dense<0x7F800000> : vector<64xf32>
    %177 = vector.multi_reduction <minimumf>, %176, %cst_44 [1] : vector<64x64xf32> to vector<64xf32>
    %178 = vector.shape_cast %177 : vector<64xf32> to vector<64x1xf32>
    %c0_45 = arith.constant 0 : index
    %179 = memref.load %arg2[%c0_45] : memref<16xf32, #tpu.memory_space<smem>>
    %c1_46 = arith.constant 1 : index
    %180 = memref.load %arg2[%c1_46] : memref<16xf32, #tpu.memory_space<smem>>
    %c2_47 = arith.constant 2 : index
    %181 = memref.load %arg2[%c2_47] : memref<16xf32, #tpu.memory_space<smem>>
    %c3_48 = arith.constant 3 : index
    %182 = memref.load %arg2[%c3_48] : memref<16xf32, #tpu.memory_space<smem>>
    %183 = vector.broadcast %179 : f32 to vector<64x1xf32>
    %184 = arith.cmpf oge, %164, %183 : vector<64x1xf32>
    %185 = vector.broadcast %180 : f32 to vector<64x1xf32>
    %186 = arith.cmpf oge, %166, %185 : vector<64x1xf32>
    %187 = arith.andi %184, %186 : vector<64x1xi1>
    %188 = vector.broadcast %181 : f32 to vector<64x1xf32>
    %189 = arith.cmpf ole, %164, %188 : vector<64x1xf32>
    %190 = arith.andi %187, %189 : vector<64x1xi1>
    %191 = vector.broadcast %182 : f32 to vector<64x1xf32>
    %192 = arith.cmpf ole, %166, %191 : vector<64x1xf32>
    %193 = arith.andi %190, %192 : vector<64x1xi1>
    %194 = arith.extui %193 : vector<64x1xi1> to vector<64x1xi32>
    %195 = arith.sitofp %194 : vector<64x1xi32> to vector<64x1xf32>
    %196 = arith.mulf %178, %195 : vector<64x1xf32>
    %197 = arith.addf %162, %196 : vector<64x1xf32>
    %198 = vector.extract_strided_slice %175 {offsets = [0, 64], sizes = [64, 64], strides = [1, 1]} : vector<64x256xf32> to vector<64x64xf32>
    %cst_49 = arith.constant dense<0x7F800000> : vector<64xf32>
    %199 = vector.multi_reduction <minimumf>, %198, %cst_49 [1] : vector<64x64xf32> to vector<64xf32>
    %200 = vector.shape_cast %199 : vector<64xf32> to vector<64x1xf32>
    %c4_50 = arith.constant 4 : index
    %201 = memref.load %arg2[%c4_50] : memref<16xf32, #tpu.memory_space<smem>>
    %c5_51 = arith.constant 5 : index
    %202 = memref.load %arg2[%c5_51] : memref<16xf32, #tpu.memory_space<smem>>
    %c6_52 = arith.constant 6 : index
    %203 = memref.load %arg2[%c6_52] : memref<16xf32, #tpu.memory_space<smem>>
    %c7_53 = arith.constant 7 : index
    %204 = memref.load %arg2[%c7_53] : memref<16xf32, #tpu.memory_space<smem>>
    %205 = vector.broadcast %201 : f32 to vector<64x1xf32>
    %206 = arith.cmpf oge, %164, %205 : vector<64x1xf32>
    %207 = vector.broadcast %202 : f32 to vector<64x1xf32>
    %208 = arith.cmpf oge, %166, %207 : vector<64x1xf32>
    %209 = arith.andi %206, %208 : vector<64x1xi1>
    %210 = vector.broadcast %203 : f32 to vector<64x1xf32>
    %211 = arith.cmpf ole, %164, %210 : vector<64x1xf32>
    %212 = arith.andi %209, %211 : vector<64x1xi1>
    %213 = vector.broadcast %204 : f32 to vector<64x1xf32>
    %214 = arith.cmpf ole, %166, %213 : vector<64x1xf32>
    %215 = arith.andi %212, %214 : vector<64x1xi1>
    %216 = arith.extui %215 : vector<64x1xi1> to vector<64x1xi32>
    %217 = arith.sitofp %216 : vector<64x1xi32> to vector<64x1xf32>
    %218 = arith.mulf %200, %217 : vector<64x1xf32>
    %219 = arith.addf %197, %218 : vector<64x1xf32>
    %220 = vector.extract_strided_slice %175 {offsets = [0, 192], sizes = [64, 64], strides = [1, 1]} : vector<64x256xf32> to vector<64x64xf32>
    %cst_54 = arith.constant dense<0x7F800000> : vector<64xf32>
    %221 = vector.multi_reduction <minimumf>, %220, %cst_54 [1] : vector<64x64xf32> to vector<64xf32>
    %222 = vector.shape_cast %221 : vector<64xf32> to vector<64x1xf32>
    %c12_55 = arith.constant 12 : index
    %223 = memref.load %arg2[%c12_55] : memref<16xf32, #tpu.memory_space<smem>>
    %c13_56 = arith.constant 13 : index
    %224 = memref.load %arg2[%c13_56] : memref<16xf32, #tpu.memory_space<smem>>
    %c14_57 = arith.constant 14 : index
    %225 = memref.load %arg2[%c14_57] : memref<16xf32, #tpu.memory_space<smem>>
    %c15_58 = arith.constant 15 : index
    %226 = memref.load %arg2[%c15_58] : memref<16xf32, #tpu.memory_space<smem>>
    %227 = vector.broadcast %223 : f32 to vector<64x1xf32>
    %228 = arith.cmpf oge, %164, %227 : vector<64x1xf32>
    %229 = vector.broadcast %224 : f32 to vector<64x1xf32>
    %230 = arith.cmpf oge, %166, %229 : vector<64x1xf32>
    %231 = arith.andi %228, %230 : vector<64x1xi1>
    %232 = vector.broadcast %225 : f32 to vector<64x1xf32>
    %233 = arith.cmpf ole, %164, %232 : vector<64x1xf32>
    %234 = arith.andi %231, %233 : vector<64x1xi1>
    %235 = vector.broadcast %226 : f32 to vector<64x1xf32>
    %236 = arith.cmpf ole, %166, %235 : vector<64x1xf32>
    %237 = arith.andi %234, %236 : vector<64x1xi1>
    %238 = arith.extui %237 : vector<64x1xi1> to vector<64x1xi32>
    %239 = arith.sitofp %238 : vector<64x1xi32> to vector<64x1xf32>
    %240 = arith.mulf %222, %239 : vector<64x1xf32>
    %241 = arith.addf %219, %240 : vector<64x1xf32>
    %c3_59 = arith.constant 3 : index
    %c0_60 = arith.constant 0 : index
    %c0_61 = arith.constant 0 : index
    %c0_62 = arith.constant 0 : index
    %242 = vector.load %arg0[%c3_59, %c0_60, %c0_61, %c0_62] : memref<4x2x64x1xf32, #tpu.memory_space<vmem>>, vector<1x1x64x1xf32>
    %243 = vector.shape_cast %242 : vector<1x1x64x1xf32> to vector<64x1xf32>
    %c3_63 = arith.constant 3 : index
    %c1_64 = arith.constant 1 : index
    %c0_65 = arith.constant 0 : index
    %c0_66 = arith.constant 0 : index
    %244 = vector.load %arg0[%c3_63, %c1_64, %c0_65, %c0_66] : memref<4x2x64x1xf32, #tpu.memory_space<vmem>>, vector<1x1x64x1xf32>
    %245 = vector.shape_cast %244 : vector<1x1x64x1xf32> to vector<64x1xf32>
    %246 = vector.broadcast %243 : vector<64x1xf32> to vector<64x256xf32>
    %247 = vector.broadcast %1 : vector<1x256xf32> to vector<64x256xf32>
    %248 = arith.subf %246, %247 : vector<64x256xf32>
    %249 = arith.mulf %248, %248 : vector<64x256xf32>
    %250 = vector.broadcast %245 : vector<64x1xf32> to vector<64x256xf32>
    %251 = vector.broadcast %3 : vector<1x256xf32> to vector<64x256xf32>
    %252 = arith.subf %250, %251 : vector<64x256xf32>
    %253 = arith.mulf %252, %252 : vector<64x256xf32>
    %254 = arith.addf %249, %253 : vector<64x256xf32>
    %255 = vector.extract_strided_slice %254 {offsets = [0, 0], sizes = [64, 64], strides = [1, 1]} : vector<64x256xf32> to vector<64x64xf32>
    %cst_67 = arith.constant dense<0x7F800000> : vector<64xf32>
    %256 = vector.multi_reduction <minimumf>, %255, %cst_67 [1] : vector<64x64xf32> to vector<64xf32>
    %257 = vector.shape_cast %256 : vector<64xf32> to vector<64x1xf32>
    %c0_68 = arith.constant 0 : index
    %258 = memref.load %arg2[%c0_68] : memref<16xf32, #tpu.memory_space<smem>>
    %c1_69 = arith.constant 1 : index
    %259 = memref.load %arg2[%c1_69] : memref<16xf32, #tpu.memory_space<smem>>
    %c2_70 = arith.constant 2 : index
    %260 = memref.load %arg2[%c2_70] : memref<16xf32, #tpu.memory_space<smem>>
    %c3_71 = arith.constant 3 : index
    %261 = memref.load %arg2[%c3_71] : memref<16xf32, #tpu.memory_space<smem>>
    %262 = vector.broadcast %258 : f32 to vector<64x1xf32>
    %263 = arith.cmpf oge, %243, %262 : vector<64x1xf32>
    %264 = vector.broadcast %259 : f32 to vector<64x1xf32>
    %265 = arith.cmpf oge, %245, %264 : vector<64x1xf32>
    %266 = arith.andi %263, %265 : vector<64x1xi1>
    %267 = vector.broadcast %260 : f32 to vector<64x1xf32>
    %268 = arith.cmpf ole, %243, %267 : vector<64x1xf32>
    %269 = arith.andi %266, %268 : vector<64x1xi1>
    %270 = vector.broadcast %261 : f32 to vector<64x1xf32>
    %271 = arith.cmpf ole, %245, %270 : vector<64x1xf32>
    %272 = arith.andi %269, %271 : vector<64x1xi1>
    %273 = arith.extui %272 : vector<64x1xi1> to vector<64x1xi32>
    %274 = arith.sitofp %273 : vector<64x1xi32> to vector<64x1xf32>
    %275 = arith.mulf %257, %274 : vector<64x1xf32>
    %276 = arith.addf %241, %275 : vector<64x1xf32>
    %277 = vector.extract_strided_slice %254 {offsets = [0, 64], sizes = [64, 64], strides = [1, 1]} : vector<64x256xf32> to vector<64x64xf32>
    %cst_72 = arith.constant dense<0x7F800000> : vector<64xf32>
    %278 = vector.multi_reduction <minimumf>, %277, %cst_72 [1] : vector<64x64xf32> to vector<64xf32>
    %279 = vector.shape_cast %278 : vector<64xf32> to vector<64x1xf32>
    %c4_73 = arith.constant 4 : index
    %280 = memref.load %arg2[%c4_73] : memref<16xf32, #tpu.memory_space<smem>>
    %c5_74 = arith.constant 5 : index
    %281 = memref.load %arg2[%c5_74] : memref<16xf32, #tpu.memory_space<smem>>
    %c6_75 = arith.constant 6 : index
    %282 = memref.load %arg2[%c6_75] : memref<16xf32, #tpu.memory_space<smem>>
    %c7_76 = arith.constant 7 : index
    %283 = memref.load %arg2[%c7_76] : memref<16xf32, #tpu.memory_space<smem>>
    %284 = vector.broadcast %280 : f32 to vector<64x1xf32>
    %285 = arith.cmpf oge, %243, %284 : vector<64x1xf32>
    %286 = vector.broadcast %281 : f32 to vector<64x1xf32>
    %287 = arith.cmpf oge, %245, %286 : vector<64x1xf32>
    %288 = arith.andi %285, %287 : vector<64x1xi1>
    %289 = vector.broadcast %282 : f32 to vector<64x1xf32>
    %290 = arith.cmpf ole, %243, %289 : vector<64x1xf32>
    %291 = arith.andi %288, %290 : vector<64x1xi1>
    %292 = vector.broadcast %283 : f32 to vector<64x1xf32>
    %293 = arith.cmpf ole, %245, %292 : vector<64x1xf32>
    %294 = arith.andi %291, %293 : vector<64x1xi1>
    %295 = arith.extui %294 : vector<64x1xi1> to vector<64x1xi32>
    %296 = arith.sitofp %295 : vector<64x1xi32> to vector<64x1xf32>
    %297 = arith.mulf %279, %296 : vector<64x1xf32>
    %298 = arith.addf %276, %297 : vector<64x1xf32>
    %299 = vector.extract_strided_slice %254 {offsets = [0, 128], sizes = [64, 64], strides = [1, 1]} : vector<64x256xf32> to vector<64x64xf32>
    %cst_77 = arith.constant dense<0x7F800000> : vector<64xf32>
    %300 = vector.multi_reduction <minimumf>, %299, %cst_77 [1] : vector<64x64xf32> to vector<64xf32>
    %301 = vector.shape_cast %300 : vector<64xf32> to vector<64x1xf32>
    %c8_78 = arith.constant 8 : index
    %302 = memref.load %arg2[%c8_78] : memref<16xf32, #tpu.memory_space<smem>>
    %c9_79 = arith.constant 9 : index
    %303 = memref.load %arg2[%c9_79] : memref<16xf32, #tpu.memory_space<smem>>
    %c10_80 = arith.constant 10 : index
    %304 = memref.load %arg2[%c10_80] : memref<16xf32, #tpu.memory_space<smem>>
    %c11_81 = arith.constant 11 : index
    %305 = memref.load %arg2[%c11_81] : memref<16xf32, #tpu.memory_space<smem>>
    %306 = vector.broadcast %302 : f32 to vector<64x1xf32>
    %307 = arith.cmpf oge, %243, %306 : vector<64x1xf32>
    %308 = vector.broadcast %303 : f32 to vector<64x1xf32>
    %309 = arith.cmpf oge, %245, %308 : vector<64x1xf32>
    %310 = arith.andi %307, %309 : vector<64x1xi1>
    %311 = vector.broadcast %304 : f32 to vector<64x1xf32>
    %312 = arith.cmpf ole, %243, %311 : vector<64x1xf32>
    %313 = arith.andi %310, %312 : vector<64x1xi1>
    %314 = vector.broadcast %305 : f32 to vector<64x1xf32>
    %315 = arith.cmpf ole, %245, %314 : vector<64x1xf32>
    %316 = arith.andi %313, %315 : vector<64x1xi1>
    %317 = arith.extui %316 : vector<64x1xi1> to vector<64x1xi32>
    %318 = arith.sitofp %317 : vector<64x1xi32> to vector<64x1xf32>
    %319 = arith.mulf %301, %318 : vector<64x1xf32>
    %320 = arith.addf %298, %319 : vector<64x1xf32>
    %321 = vector.shape_cast %320 : vector<64x1xf32> to vector<1x64x1xf32>
    %cst_82 = arith.constant dense<0.000000e+00> : vector<1xf32>
    %322 = vector.multi_reduction <add>, %321, %cst_82 [1, 2] : vector<1x64x1xf32> to vector<1xf32>
    %323 = vector.shape_cast %322 : vector<1xf32> to vector<1x1x1xf32>
    %324 = vector.extract %323[0, 0, 0] : f32 from vector<1x1x1xf32>
    %cst_83 = arith.constant 0.0039682542 : f32
    %325 = arith.mulf %324, %cst_83 : f32
    %326 = vector.broadcast %325 : f32 to vector<1x128xf32>
    %c0_84 = arith.constant 0 : index
    %c0_85 = arith.constant 0 : index
    %327 = vector.load %arg3[%c0_84, %c0_85] : memref<1x128xf32, #tpu.memory_space<vmem>>, vector<1x128xf32>
    tpu.vector_store %arg3[%c0_84, %c0_85], %326 {strides = array<i32>} : memref<1x128xf32, #tpu.memory_space<vmem>>, vector<1x128xf32>,
    return
  }
}

</mosaic_0001>

<llo_original>
// kernel: mutex_loss_forward.1
$region0: #{mutex_loss_forward.1}
  #allocation0 [shape = 'u32[]', space=smem, size = 0x4, offset = 0x4, fixed_abs, tag = 'smem constant byte address 0x4 - core index']
  #allocation1 [shape = 'u32[144,128]{1,0:T(1,128)}', space=vmem, size = 0x12000, scoped, tag = 'internal scratch']
  %s0 = inlined_call_operand.vmem [shape: f32[4,2,64,1], index: 0, kind: input, shape index: {}]
  %s1 = inlined_call_operand.vmem [shape: f32[2,1,256], index: 1, kind: input, shape index: {}]
  %s2 = inlined_call_operand.vmem [shape: f32[16], index: 2, kind: input, shape index: {}]
  %s3 = inlined_call_operand.hbm [shape: f32[1,128], index: 3, kind: output, shape index: {}]
  %s4 = sld [smem:[#allocation0]]
  $region26: #{mutex_loss_forward.1} parent=0
    _
  %s6 = ssub.s32 1, %s4
  %s7 = scalar_select 0, %s6, %s4
  $region1: #{mutex_loss_forward.1} parent=0
    #allocation2 [shape = 'u8[512]{0}', space=smem, size = 0x200, scoped, tag = 'input window, operand 2, single buffered']
    #allocation3 [shape = 's32[1]{0}', space=sflag, size = 0x4, scoped, tag = 'scoped memory for mutex_loss_forward.1']
    #allocation4 [shape = 's32[1]{0}', space=sflag, size = 0x4, scoped, tag = 'scoped memory for mutex_loss_forward.1']
    #allocation5 [shape = 'u8[512]{0}', space=vmem, size = 0x400, scoped, tag = 'output window, operand 0, single buffered']
    %8 = vsyncpa [#allocation4], 0
    %9 = vsyncpa [#allocation3], 0
    // Predicated region
    $region2: #{mutex_loss_forward.1} parent=1 // pred_check
      _
    $region3: #{mutex_loss_forward.1} parent=1 // pred_check_branch
      %11 = sbr.rel (0) target = $region5
    $region4: #{mutex_loss_forward.1} parent=1 // pred_region
      _
    $region5: #{mutex_loss_forward.1} parent=1 // pred_fallthru
      _
    // Predicated region
    $region6: #{mutex_loss_forward.1} parent=1 // pred_check
      _
    $region7: #{mutex_loss_forward.1} parent=1 // pred_check_branch
      %13 = sbr.rel (0) target = $region9
    $region8: #{mutex_loss_forward.1} parent=1 // pred_region
      _
    $region9: #{mutex_loss_forward.1} parent=1 // pred_fallthru
      _
    // Predicated region
    $region10: #{mutex_loss_forward.1} parent=1 // pred_check
      _
    $region11: #{mutex_loss_forward.1} parent=1 // pred_check_branch
      %15 = sbr.rel (0) target = $region13
    $region12: #{mutex_loss_forward.1} parent=1 // pred_region
      %s17 = ssub.s32 16, 16
      %18 = vsyncadd [#allocation4], %s17
      %s20 = sshll.u32 %s2, 4
      %s21 = int_to_ptr.vmem [resolvable:$true] %s20
      %23 = dma.vmem_to_smem %s21, 16, [#allocation2], [#allocation4]
    $region13: #{mutex_loss_forward.1} parent=1 // pred_fallthru
      _
    // Predicated region
    $region14: #{mutex_loss_forward.1} parent=1 // pred_check
      _
    $region15: #{mutex_loss_forward.1} parent=1 // pred_check_branch
      %25 = sbr.rel (0) target = $region17
    $region16: #{mutex_loss_forward.1} parent=1 // pred_region
      %26 = dma.done [#allocation4], 16
    $region17: #{mutex_loss_forward.1} parent=1 // pred_fallthru
      _
    %27 = sfence
    %v28 = vld [vmem:[%s1] sm:$0x3]
    %s29 = scalar_lea.vmem %s1, 2
    %v30 = vld [vmem:[%s29] sm:$0x3]
    %v31 = vld [vmem:[%s0] sm:$0xff]
    %v32 = vld [vmem:[%s0 + $0x8] sm:$0xff]
    %v33 = vld [vmem:[%s0 + $0x10] sm:$0xff]
    %v34 = vld [vmem:[%s0 + $0x18] sm:$0xff]
    %v35 = vld [vmem:[%s0 + $0x20] sm:$0xff]
    %v36 = vld [vmem:[%s0 + $0x28] sm:$0xff]
    %v37 = vld [vmem:[%s0 + $0x30] sm:$0xff]
    %v38 = vld [vmem:[%s0 + $0x38] sm:$0xff]
    %s39 = scalar_lea.vmem %s0, 64
    %v40 = vld [vmem:[%s39] sm:$0xff]
    %v41 = vld [vmem:[%s39 + $0x8] sm:$0xff]
    %v42 = vld [vmem:[%s39 + $0x10] sm:$0xff]
    %v43 = vld [vmem:[%s39 + $0x18] sm:$0xff]
    %v44 = vld [vmem:[%s39 + $0x20] sm:$0xff]
    %v45 = vld [vmem:[%s39 + $0x28] sm:$0xff]
    %v46 = vld [vmem:[%s39 + $0x30] sm:$0xff]
    %v47 = vld [vmem:[%s39 + $0x38] sm:$0xff]
    %49 = vset.pattern.permute.xlu0 0
    %50 = vperm.xlu0 %49, %v31
    %v51 = vpop.permute.xlu0 %50
    %54 = vset.pattern.permute.xlu0 0
    %55 = vperm.xlu0 %54, %v32
    %v56 = vpop.permute.xlu0 %55
    %59 = vset.pattern.permute.xlu0 0
    %60 = vperm.xlu0 %59, %v33
    %v61 = vpop.permute.xlu0 %60
    %64 = vset.pattern.permute.xlu0 0
    %65 = vperm.xlu0 %64, %v34
    %v66 = vpop.permute.xlu0 %65
    %69 = vset.pattern.permute.xlu0 0
    %70 = vperm.xlu0 %69, %v35
    %v71 = vpop.permute.xlu0 %70
    %74 = vset.pattern.permute.xlu0 0
    %75 = vperm.xlu0 %74, %v36
    %v76 = vpop.permute.xlu0 %75
    %79 = vset.pattern.permute.xlu0 0
    %80 = vperm.xlu0 %79, %v37
    %v81 = vpop.permute.xlu0 %80
    %84 = vset.pattern.permute.xlu0 0
    %85 = vperm.xlu0 %84, %v38
    %v86 = vpop.permute.xlu0 %85
    %v89 = vlaneseq
    %v90 = vshrl.u32 %v89, 7
    %v91 = vsub.s32 0, %v90
    %v92 = vrot.slane %v28, %v91
    %v93 = vlaneseq
    %v94 = vshrl.u32 %v93, 7
    %v95 = vsub.s32 1, %v94
    %v96 = vrot.slane %v28, %v95
    %v99 = vsub.f32 %v51, %v92
    %v100 = vsub.f32 %v51, %v96
    %v101 = vsub.f32 %v56, %v92
    %v102 = vsub.f32 %v56, %v96
    %v103 = vsub.f32 %v61, %v92
    %v104 = vsub.f32 %v61, %v96
    %v105 = vsub.f32 %v66, %v92
    %v106 = vsub.f32 %v66, %v96
    %v107 = vsub.f32 %v71, %v92
    %v108 = vsub.f32 %v71, %v96
    %v109 = vsub.f32 %v76, %v92
    %v110 = vsub.f32 %v76, %v96
    %v111 = vsub.f32 %v81, %v92
    %v112 = vsub.f32 %v81, %v96
    %v113 = vsub.f32 %v86, %v92
    %v114 = vsub.f32 %v86, %v96
    %v115 = vmul.f32 %v99, %v99
    %v116 = vmul.f32 %v100, %v100
    %v117 = vmul.f32 %v101, %v101
    %v118 = vmul.f32 %v102, %v102
    %v119 = vmul.f32 %v103, %v103
    %v120 = vmul.f32 %v104, %v104
    %v121 = vmul.f32 %v105, %v105
    %v122 = vmul.f32 %v106, %v106
    %v123 = vmul.f32 %v107, %v107
    %v124 = vmul.f32 %v108, %v108
    %v125 = vmul.f32 %v109, %v109
    %v126 = vmul.f32 %v110, %v110
    %v127 = vmul.f32 %v111, %v111
    %v128 = vmul.f32 %v112, %v112
    %v129 = vmul.f32 %v113, %v113
    %v130 = vmul.f32 %v114, %v114
    %132 = vset.pattern.permute.xlu0 0
    %133 = vperm.xlu0 %132, %v40
    %v134 = vpop.permute.xlu0 %133
    %137 = vset.pattern.permute.xlu0 0
    %138 = vperm.xlu0 %137, %v41
    %v139 = vpop.permute.xlu0 %138
    %142 = vset.pattern.permute.xlu0 0
    %143 = vperm.xlu0 %142, %v42
    %v144 = vpop.permute.xlu0 %143
    %147 = vset.pattern.permute.xlu0 0
    %148 = vperm.xlu0 %147, %v43
    %v149 = vpop.permute.xlu0 %148
    %152 = vset.pattern.permute.xlu0 0
    %153 = vperm.xlu0 %152, %v44
    %v154 = vpop.permute.xlu0 %153
    %157 = vset.pattern.permute.xlu0 0
    %158 = vperm.xlu0 %157, %v45
    %v159 = vpop.permute.xlu0 %158
    %162 = vset.pattern.permute.xlu0 0
    %163 = vperm.xlu0 %162, %v46
    %v164 = vpop.permute.xlu0 %163
    %167 = vset.pattern.permute.xlu0 0
    %168 = vperm.xlu0 %167, %v47
    %v169 = vpop.permute.xlu0 %168
    %v172 = vlaneseq
    %v173 = vshrl.u32 %v172, 7
    %v174 = vsub.s32 0, %v173
    %v175 = vrot.slane %v30, %v174
    %v176 = vlaneseq
    %v177 = vshrl.u32 %v176, 7
    %v178 = vsub.s32 1, %v177
    %v179 = vrot.slane %v30, %v178
    %v182 = vsub.f32 %v134, %v175
    %v183 = vsub.f32 %v134, %v179
    %v184 = vsub.f32 %v139, %v175
    %v185 = vsub.f32 %v139, %v179
    %v186 = vsub.f32 %v144, %v175
    %v187 = vsub.f32 %v144, %v179
    %v188 = vsub.f32 %v149, %v175
    %v189 = vsub.f32 %v149, %v179
    %v190 = vsub.f32 %v154, %v175
    %v191 = vsub.f32 %v154, %v179
    %v192 = vsub.f32 %v159, %v175
    %v193 = vsub.f32 %v159, %v179
    %v194 = vsub.f32 %v164, %v175
    %v195 = vsub.f32 %v164, %v179
    %v196 = vsub.f32 %v169, %v175
    %v197 = vsub.f32 %v169, %v179
    %v198 = vmul.f32 %v182, %v182
    %v199 = vmul.f32 %v183, %v183
    %v200 = vmul.f32 %v184, %v184
    %v201 = vmul.f32 %v185, %v185
    %v202 = vmul.f32 %v186, %v186
    %v203 = vmul.f32 %v187, %v187
    %v204 = vmul.f32 %v188, %v188
    %v205 = vmul.f32 %v189, %v189
    %v206 = vmul.f32 %v190, %v190
    %v207 = vmul.f32 %v191, %v191
    %v208 = vmul.f32 %v192, %v192
    %v209 = vmul.f32 %v193, %v193
    %v210 = vmul.f32 %v194, %v194
    %v211 = vmul.f32 %v195, %v195
    %v212 = vmul.f32 %v196, %v196
    %v213 = vmul.f32 %v197, %v197
    %v214 = vadd.f32 %v115, %v198
    %v215 = vadd.f32 %v116, %v199
    %v216 = vadd.f32 %v117, %v200
    %v217 = vadd.f32 %v118, %v201
    %v218 = vadd.f32 %v119, %v202
    %v219 = vadd.f32 %v120, %v203
    %v220 = vadd.f32 %v121, %v204
    %v221 = vadd.f32 %v122, %v205
    %v222 = vadd.f32 %v123, %v206
    %v223 = vadd.f32 %v124, %v207
    %v224 = vadd.f32 %v125, %v208
    %v225 = vadd.f32 %v126, %v209
    %v226 = vadd.f32 %v127, %v210
    %v227 = vadd.f32 %v128, %v211
    %v228 = vadd.f32 %v129, %v212
    %v229 = vadd.f32 %v130, %v213
    %vm230 = vcmask 1048064
    %v231 = vsel %vm230, %v214, inf
    %232 = vmin.xlane.f32.xlu0 %v231
    %v233 = vpop.xlane.xlu0 %232
    %v234 = vsel %vm230, %v216, inf
    %235 = vmin.xlane.f32.xlu0 %v234
    %v236 = vpop.xlane.xlu0 %235
    %v237 = vsel %vm230, %v218, inf
    %238 = vmin.xlane.f32.xlu0 %v237
    %v239 = vpop.xlane.xlu0 %238
    %v240 = vsel %vm230, %v220, inf
    %241 = vmin.xlane.f32.xlu0 %v240
    %v242 = vpop.xlane.xlu0 %241
    %v243 = vsel %vm230, %v222, inf
    %244 = vmin.xlane.f32.xlu0 %v243
    %v245 = vpop.xlane.xlu0 %244
    %v246 = vsel %vm230, %v224, inf
    %247 = vmin.xlane.f32.xlu0 %v246
    %v248 = vpop.xlane.xlu0 %247
    %v249 = vsel %vm230, %v226, inf
    %250 = vmin.xlane.f32.xlu0 %v249
    %v251 = vpop.xlane.xlu0 %250
    %v252 = vsel %vm230, %v228, inf
    %253 = vmin.xlane.f32.xlu0 %v252
    %v254 = vpop.xlane.xlu0 %253
    %s255 = sld [smem:[#allocation2 + $0x4]]
    %s256 = sld [smem:[#allocation2 + $0x5]]
    %s257 = sld [smem:[#allocation2 + $0x6]]
    %s258 = sld [smem:[#allocation2 + $0x7]]
    %v259 = vstv %s255
    %vm260 = vcmp.ge.f32.partialorder %v31, %v259
    %vm261 = vcmp.ge.f32.partialorder %v32, %v259
    %vm262 = vcmp.ge.f32.partialorder %v33, %v259
    %vm263 = vcmp.ge.f32.partialorder %v34, %v259
    %vm264 = vcmp.ge.f32.partialorder %v35, %v259
    %vm265 = vcmp.ge.f32.partialorder %v36, %v259
    %vm266 = vcmp.ge.f32.partialorder %v37, %v259
    %vm267 = vcmp.ge.f32.partialorder %v38, %v259
    %v268 = vstv %s256
    %vm269 = vcmp.ge.f32.partialorder %v40, %v268
    %vm270 = vcmp.ge.f32.partialorder %v41, %v268
    %vm271 = vcmp.ge.f32.partialorder %v42, %v268
    %vm272 = vcmp.ge.f32.partialorder %v43, %v268
    %vm273 = vcmp.ge.f32.partialorder %v44, %v268
    %vm274 = vcmp.ge.f32.partialorder %v45, %v268
    %vm275 = vcmp.ge.f32.partialorder %v46, %v268
    %vm276 = vcmp.ge.f32.partialorder %v47, %v268
    %vm277 = vmand %vm260, %vm269
    %vm278 = vmand %vm261, %vm270
    %vm279 = vmand %vm262, %vm271
    %vm280 = vmand %vm263, %vm272
    %vm281 = vmand %vm264, %vm273
    %vm282 = vmand %vm265, %vm274
    %vm283 = vmand %vm266, %vm275
    %vm284 = vmand %vm267, %vm276
    %v285 = vstv %s257
    %vm286 = vcmp.le.f32.partialorder %v31, %v285
    %vm287 = vcmp.le.f32.partialorder %v32, %v285
    %vm288 = vcmp.le.f32.partialorder %v33, %v285
    %vm289 = vcmp.le.f32.partialorder %v34, %v285
    %vm290 = vcmp.le.f32.partialorder %v35, %v285
    %vm291 = vcmp.le.f32.partialorder %v36, %v285
    %vm292 = vcmp.le.f32.partialorder %v37, %v285
    %vm293 = vcmp.le.f32.partialorder %v38, %v285
    %vm294 = vmand %vm277, %vm286
    %vm295 = vmand %vm278, %vm287
    %vm296 = vmand %vm279, %vm288
    %vm297 = vmand %vm280, %vm289
    %vm298 = vmand %vm281, %vm290
    %vm299 = vmand %vm282, %vm291
    %vm300 = vmand %vm283, %vm292
    %vm301 = vmand %vm284, %vm293
    %v302 = vstv %s258
    %vm303 = vcmp.le.f32.partialorder %v40, %v302
    %vm304 = vcmp.le.f32.partialorder %v41, %v302
    %vm305 = vcmp.le.f32.partialorder %v42, %v302
    %vm306 = vcmp.le.f32.partialorder %v43, %v302
    %vm307 = vcmp.le.f32.partialorder %v44, %v302
    %vm308 = vcmp.le.f32.partialorder %v45, %v302
    %vm309 = vcmp.le.f32.partialorder %v46, %v302
    %vm310 = vcmp.le.f32.partialorder %v47, %v302
    %vm311 = vmand %vm294, %vm303
    %vm312 = vmand %vm295, %vm304
    %vm313 = vmand %vm296, %vm305
    %vm314 = vmand %vm297, %vm306
    %vm315 = vmand %vm298, %vm307
    %vm316 = vmand %vm299, %vm308
    %vm317 = vmand %vm300, %vm309
    %vm318 = vmand %vm301, %vm310
    %v319 = vsel %vm311, 1, 0
    %v320 = vsel %vm312, 1, 0
    %v321 = vsel %vm313, 1, 0
    %v322 = vsel %vm314, 1, 0
    %v323 = vsel %vm315, 1, 0
    %v324 = vsel %vm316, 1, 0
    %v325 = vsel %vm317, 1, 0
    %v326 = vsel %vm318, 1, 0
    %v327 = vcvt.s32.f32 %v319
    %v328 = vcvt.s32.f32 %v320
    %v329 = vcvt.s32.f32 %v321
    %v330 = vcvt.s32.f32 %v322
    %v331 = vcvt.s32.f32 %v323
    %v332 = vcvt.s32.f32 %v324
    %v333 = vcvt.s32.f32 %v325
    %v334 = vcvt.s32.f32 %v326
    %v335 = vmul.f32 %v233, %v327
    %v336 = vmul.f32 %v236, %v328
    %v337 = vmul.f32 %v239, %v329
    %v338 = vmul.f32 %v242, %v330
    %v339 = vmul.f32 %v245, %v331
    %v340 = vmul.f32 %v248, %v332
    %v341 = vmul.f32 %v251, %v333
    %v342 = vmul.f32 %v254, %v334
    %v343 = vadd.f32 %v335, 0.0
    %v344 = vadd.f32 %v336, 0.0
    %v345 = vadd.f32 %v337, 0.0
    %v346 = vadd.f32 %v338, 0.0
    %v347 = vadd.f32 %v339, 0.0
    %v348 = vadd.f32 %v340, 0.0
    %v349 = vadd.f32 %v341, 0.0
    %v350 = vadd.f32 %v342, 0.0
    %vm351 = vcmask 523264
    %v352 = vsel %vm351, %v215, inf
    %353 = vmin.xlane.f32.xlu0 %v352
    %v354 = vpop.xlane.xlu0 %353
    %v355 = vsel %vm351, %v217, inf
    %356 = vmin.xlane.f32.xlu0 %v355
    %v357 = vpop.xlane.xlu0 %356
    %v358 = vsel %vm351, %v219, inf
    %359 = vmin.xlane.f32.xlu0 %v358
    %v360 = vpop.xlane.xlu0 %359
    %v361 = vsel %vm351, %v221, inf
    %362 = vmin.xlane.f32.xlu0 %v361
    %v363 = vpop.xlane.xlu0 %362
    %v364 = vsel %vm351, %v223, inf
    %365 = vmin.xlane.f32.xlu0 %v364
    %v366 = vpop.xlane.xlu0 %365
    %v367 = vsel %vm351, %v225, inf
    %368 = vmin.xlane.f32.xlu0 %v367
    %v369 = vpop.xlane.xlu0 %368
    %v370 = vsel %vm351, %v227, inf
    %371 = vmin.xlane.f32.xlu0 %v370
    %v372 = vpop.xlane.xlu0 %371
    %v373 = vsel %vm351, %v229, inf
    %374 = vmin.xlane.f32.xlu0 %v373
    %v375 = vpop.xlane.xlu0 %374
    %s376 = sld [smem:[#allocation2 + $0x8]]
    %s377 = sld [smem:[#allocation2 + $0x9]]
    %s378 = sld [smem:[#allocation2 + $0xa]]
    %s379 = sld [smem:[#allocation2 + $0xb]]
    %v380 = vstv %s376
    %vm381 = vcmp.ge.f32.partialorder %v31, %v380
    %vm382 = vcmp.ge.f32.partialorder %v32, %v380
    %vm383 = vcmp.ge.f32.partialorder %v33, %v380
    %vm384 = vcmp.ge.f32.partialorder %v34, %v380
    %vm385 = vcmp.ge.f32.partialorder %v35, %v380
    %vm386 = vcmp.ge.f32.partialorder %v36, %v380
    %vm387 = vcmp.ge.f32.partialorder %v37, %v380
    %vm388 = vcmp.ge.f32.partialorder %v38, %v380
    %v389 = vstv %s377
    %vm390 = vcmp.ge.f32.partialorder %v40, %v389
    %vm391 = vcmp.ge.f32.partialorder %v41, %v389
    %vm392 = vcmp.ge.f32.partialorder %v42, %v389
    %vm393 = vcmp.ge.f32.partialorder %v43, %v389
    %vm394 = vcmp.ge.f32.partialorder %v44, %v389
    %vm395 = vcmp.ge.f32.partialorder %v45, %v389
    %vm396 = vcmp.ge.f32.partialorder %v46, %v389
    %vm397 = vcmp.ge.f32.partialorder %v47, %v389
    %vm398 = vmand %vm381, %vm390
    %vm399 = vmand %vm382, %vm391
    %vm400 = vmand %vm383, %vm392
    %vm401 = vmand %vm384, %vm393
    %vm402 = vmand %vm385, %vm394
    %vm403 = vmand %vm386, %vm395
    %vm404 = vmand %vm387, %vm396
    %vm405 = vmand %vm388, %vm397
    %v406 = vstv %s378
    %vm407 = vcmp.le.f32.partialorder %v31, %v406
    %vm408 = vcmp.le.f32.partialorder %v32, %v406
    %vm409 = vcmp.le.f32.partialorder %v33, %v406
    %vm410 = vcmp.le.f32.partialorder %v34, %v406
    %vm411 = vcmp.le.f32.partialorder %v35, %v406
    %vm412 = vcmp.le.f32.partialorder %v36, %v406
    %vm413 = vcmp.le.f32.partialorder %v37, %v406
    %vm414 = vcmp.le.f32.partialorder %v38, %v406
    %vm415 = vmand %vm398, %vm407
    %vm416 = vmand %vm399, %vm408
    %vm417 = vmand %vm400, %vm409
    %vm418 = vmand %vm401, %vm410
    %vm419 = vmand %vm402, %vm411
    %vm420 = vmand %vm403, %vm412
    %vm421 = vmand %vm404, %vm413
    %vm422 = vmand %vm405, %vm414
    %v423 = vstv %s379
    %vm424 = vcmp.le.f32.partialorder %v40, %v423
    %vm425 = vcmp.le.f32.partialorder %v41, %v423
    %vm426 = vcmp.le.f32.partialorder %v42, %v423
    %vm427 = vcmp.le.f32.partialorder %v43, %v423
    %vm428 = vcmp.le.f32.partialorder %v44, %v423
    %vm429 = vcmp.le.f32.partialorder %v45, %v423
    %vm430 = vcmp.le.f32.partialorder %v46, %v423
    %vm431 = vcmp.le.f32.partialorder %v47, %v423
    %vm432 = vmand %vm415, %vm424
    %vm433 = vmand %vm416, %vm425
    %vm434 = vmand %vm417, %vm426
    %vm435 = vmand %vm418, %vm427
    %vm436 = vmand %vm419, %vm428
    %vm437 = vmand %vm420, %vm429
    %vm438 = vmand %vm421, %vm430
    %vm439 = vmand %vm422, %vm431
    %v440 = vsel %vm432, 1, 0
    %v441 = vsel %vm433, 1, 0
    %v442 = vsel %vm434, 1, 0
    %v443 = vsel %vm435, 1, 0
    %v444 = vsel %vm436, 1, 0
    %v445 = vsel %vm437, 1, 0
    %v446 = vsel %vm438, 1, 0
    %v447 = vsel %vm439, 1, 0
    %v448 = vcvt.s32.f32 %v440
    %v449 = vcvt.s32.f32 %v441
    %v450 = vcvt.s32.f32 %v442
    %v451 = vcvt.s32.f32 %v443
    %v452 = vcvt.s32.f32 %v444
    %v453 = vcvt.s32.f32 %v445
    %v454 = vcvt.s32.f32 %v446
    %v455 = vcvt.s32.f32 %v447
    %v456 = vmul.f32 %v354, %v448
    %v457 = vmul.f32 %v357, %v449
    %v458 = vmul.f32 %v360, %v450
    %v459 = vmul.f32 %v363, %v451
    %v460 = vmul.f32 %v366, %v452
    %v461 = vmul.f32 %v369, %v453
    %v462 = vmul.f32 %v372, %v454
    %v463 = vmul.f32 %v375, %v455
    %v464 = vadd.f32 %v343, %v456
    %v465 = vadd.f32 %v344, %v457
    %v466 = vadd.f32 %v345, %v458
    %v467 = vadd.f32 %v346, %v459
    %v468 = vadd.f32 %v347, %v460
    %v469 = vadd.f32 %v348, %v461
    %v470 = vadd.f32 %v349, %v462
    %v471 = vadd.f32 %v350, %v463
    %v472 = vsel %vm230, %v215, inf
    %473 = vmin.xlane.f32.xlu0 %v472
    %v474 = vpop.xlane.xlu0 %473
    %v475 = vsel %vm230, %v217, inf
    %476 = vmin.xlane.f32.xlu0 %v475
    %v477 = vpop.xlane.xlu0 %476
    %v478 = vsel %vm230, %v219, inf
    %479 = vmin.xlane.f32.xlu0 %v478
    %v480 = vpop.xlane.xlu0 %479
    %v481 = vsel %vm230, %v221, inf
    %482 = vmin.xlane.f32.xlu0 %v481
    %v483 = vpop.xlane.xlu0 %482
    %v484 = vsel %vm230, %v223, inf
    %485 = vmin.xlane.f32.xlu0 %v484
    %v486 = vpop.xlane.xlu0 %485
    %v487 = vsel %vm230, %v225, inf
    %488 = vmin.xlane.f32.xlu0 %v487
    %v489 = vpop.xlane.xlu0 %488
    %v490 = vsel %vm230, %v227, inf
    %491 = vmin.xlane.f32.xlu0 %v490
    %v492 = vpop.xlane.xlu0 %491
    %v493 = vsel %vm230, %v229, inf
    %494 = vmin.xlane.f32.xlu0 %v493
    %v495 = vpop.xlane.xlu0 %494
    %s496 = sld [smem:[#allocation2 + $0xc]]
    %s497 = sld [smem:[#allocation2 + $0xd]]
    %s498 = sld [smem:[#allocation2 + $0xe]]
    %s499 = sld [smem:[#allocation2 + $0xf]]
    %v500 = vstv %s496
    %vm501 = vcmp.ge.f32.partialorder %v31, %v500
    %vm502 = vcmp.ge.f32.partialorder %v32, %v500
    %vm503 = vcmp.ge.f32.partialorder %v33, %v500
    %vm504 = vcmp.ge.f32.partialorder %v34, %v500
    %vm505 = vcmp.ge.f32.partialorder %v35, %v500
    %vm506 = vcmp.ge.f32.partialorder %v36, %v500
    %vm507 = vcmp.ge.f32.partialorder %v37, %v500
    %vm508 = vcmp.ge.f32.partialorder %v38, %v500
    %v509 = vstv %s497
    %vm510 = vcmp.ge.f32.partialorder %v40, %v509
    %vm511 = vcmp.ge.f32.partialorder %v41, %v509
    %vm512 = vcmp.ge.f32.partialorder %v42, %v509
    %vm513 = vcmp.ge.f32.partialorder %v43, %v509
    %vm514 = vcmp.ge.f32.partialorder %v44, %v509
    %vm515 = vcmp.ge.f32.partialorder %v45, %v509
    %vm516 = vcmp.ge.f32.partialorder %v46, %v509
    %vm517 = vcmp.ge.f32.partialorder %v47, %v509
    %vm518 = vmand %vm501, %vm510
    %vm519 = vmand %vm502, %vm511
    %vm520 = vmand %vm503, %vm512
    %vm521 = vmand %vm504, %vm513
    %vm522 = vmand %vm505, %vm514
    %vm523 = vmand %vm506, %vm515
    %vm524 = vmand %vm507, %vm516
    %vm525 = vmand %vm508, %vm517
    %v526 = vstv %s498
    %vm527 = vcmp.le.f32.partialorder %v31, %v526
    %vm528 = vcmp.le.f32.partialorder %v32, %v526
    %vm529 = vcmp.le.f32.partialorder %v33, %v526
    %vm530 = vcmp.le.f32.partialorder %v34, %v526
    %vm531 = vcmp.le.f32.partialorder %v35, %v526
    %vm532 = vcmp.le.f32.partialorder %v36, %v526
    %vm533 = vcmp.le.f32.partialorder %v37, %v526
    %vm534 = vcmp.le.f32.partialorder %v38, %v526
    %vm535 = vmand %vm518, %vm527
    %vm536 = vmand %vm519, %vm528
    %vm537 = vmand %vm520, %vm529
    %vm538 = vmand %vm521, %vm530
    %vm539 = vmand %vm522, %vm531
    %vm540 = vmand %vm523, %vm532
    %vm541 = vmand %vm524, %vm533
    %vm542 = vmand %vm525, %vm534
    %v543 = vstv %s499
    %vm544 = vcmp.le.f32.partialorder %v40, %v543
    %vm545 = vcmp.le.f32.partialorder %v41, %v543
    %vm546 = vcmp.le.f32.partialorder %v42, %v543
    %vm547 = vcmp.le.f32.partialorder %v43, %v543
    %vm548 = vcmp.le.f32.partialorder %v44, %v543
    %vm549 = vcmp.le.f32.partialorder %v45, %v543
    %vm550 = vcmp.le.f32.partialorder %v46, %v543
    %vm551 = vcmp.le.f32.partialorder %v47, %v543
    %vm552 = vmand %vm535, %vm544
    %vm553 = vmand %vm536, %vm545
    %vm554 = vmand %vm537, %vm546
    %vm555 = vmand %vm538, %vm547
    %vm556 = vmand %vm539, %vm548
    %vm557 = vmand %vm540, %vm549
    %vm558 = vmand %vm541, %vm550
    %vm559 = vmand %vm542, %vm551
    %v560 = vsel %vm552, 1, 0
    %v561 = vsel %vm553, 1, 0
    %v562 = vsel %vm554, 1, 0
    %v563 = vsel %vm555, 1, 0
    %v564 = vsel %vm556, 1, 0
    %v565 = vsel %vm557, 1, 0
    %v566 = vsel %vm558, 1, 0
    %v567 = vsel %vm559, 1, 0
    %v568 = vcvt.s32.f32 %v560
    %v569 = vcvt.s32.f32 %v561
    %v570 = vcvt.s32.f32 %v562
    %v571 = vcvt.s32.f32 %v563
    %v572 = vcvt.s32.f32 %v564
    %v573 = vcvt.s32.f32 %v565
    %v574 = vcvt.s32.f32 %v566
    %v575 = vcvt.s32.f32 %v567
    %v576 = vmul.f32 %v474, %v568
    %v577 = vmul.f32 %v477, %v569
    %v578 = vmul.f32 %v480, %v570
    %v579 = vmul.f32 %v483, %v571
    %v580 = vmul.f32 %v486, %v572
    %v581 = vmul.f32 %v489, %v573
    %v582 = vmul.f32 %v492, %v574
    %v583 = vmul.f32 %v495, %v575
    %v584 = vadd.f32 %v464, %v576
    %v585 = vadd.f32 %v465, %v577
    %v586 = vadd.f32 %v466, %v578
    %v587 = vadd.f32 %v467, %v579
    %v588 = vadd.f32 %v468, %v580
    %v589 = vadd.f32 %v469, %v581
    %v590 = vadd.f32 %v470, %v582
    %v591 = vadd.f32 %v471, %v583
    %s592 = scalar_lea.vmem %s0, 128
    %v593 = vld [vmem:[%s592] sm:$0xff]
    %v594 = vld [vmem:[%s592 + $0x8] sm:$0xff]
    %v595 = vld [vmem:[%s592 + $0x10] sm:$0xff]
    %v596 = vld [vmem:[%s592 + $0x18] sm:$0xff]
    %v597 = vld [vmem:[%s592 + $0x20] sm:$0xff]
    %v598 = vld [vmem:[%s592 + $0x28] sm:$0xff]
    %v599 = vld [vmem:[%s592 + $0x30] sm:$0xff]
    %v600 = vld [vmem:[%s592 + $0x38] sm:$0xff]
    %s601 = scalar_lea.vmem %s0, 192
    %v602 = vld [vmem:[%s601] sm:$0xff]
    %v603 = vld [vmem:[%s601 + $0x8] sm:$0xff]
    %v604 = vld [vmem:[%s601 + $0x10] sm:$0xff]
    %v605 = vld [vmem:[%s601 + $0x18] sm:$0xff]
    %v606 = vld [vmem:[%s601 + $0x20] sm:$0xff]
    %v607 = vld [vmem:[%s601 + $0x28] sm:$0xff]
    %v608 = vld [vmem:[%s601 + $0x30] sm:$0xff]
    %v609 = vld [vmem:[%s601 + $0x38] sm:$0xff]
    %611 = vset.pattern.permute.xlu0 0
    %612 = vperm.xlu0 %611, %v593
    %v613 = vpop.permute.xlu0 %612
    %616 = vset.pattern.permute.xlu0 0
    %617 = vperm.xlu0 %616, %v594
    %v618 = vpop.permute.xlu0 %617
    %621 = vset.pattern.permute.xlu0 0
    %622 = vperm.xlu0 %621, %v595
    %v623 = vpop.permute.xlu0 %622
    %626 = vset.pattern.permute.xlu0 0
    %627 = vperm.xlu0 %626, %v596
    %v628 = vpop.permute.xlu0 %627
    %631 = vset.pattern.permute.xlu0 0
    %632 = vperm.xlu0 %631, %v597
    %v633 = vpop.permute.xlu0 %632
    %636 = vset.pattern.permute.xlu0 0
    %637 = vperm.xlu0 %636, %v598
    %v638 = vpop.permute.xlu0 %637
    %641 = vset.pattern.permute.xlu0 0
    %642 = vperm.xlu0 %641, %v599
    %v643 = vpop.permute.xlu0 %642
    %646 = vset.pattern.permute.xlu0 0
    %647 = vperm.xlu0 %646, %v600
    %v648 = vpop.permute.xlu0 %647
    %v650 = vsub.f32 %v613, %v92
    %v651 = vsub.f32 %v613, %v96
    %v652 = vsub.f32 %v618, %v92
    %v653 = vsub.f32 %v618, %v96
    %v654 = vsub.f32 %v623, %v92
    %v655 = vsub.f32 %v623, %v96
    %v656 = vsub.f32 %v628, %v92
    %v657 = vsub.f32 %v628, %v96
    %v658 = vsub.f32 %v633, %v92
    %v659 = vsub.f32 %v633, %v96
    %v660 = vsub.f32 %v638, %v92
    %v661 = vsub.f32 %v638, %v96
    %v662 = vsub.f32 %v643, %v92
    %v663 = vsub.f32 %v643, %v96
    %v664 = vsub.f32 %v648, %v92
    %v665 = vsub.f32 %v648, %v96
    %v666 = vmul.f32 %v650, %v650
    %v667 = vmul.f32 %v651, %v651
    %v668 = vmul.f32 %v652, %v652
    %v669 = vmul.f32 %v653, %v653
    %v670 = vmul.f32 %v654, %v654
    %v671 = vmul.f32 %v655, %v655
    %v672 = vmul.f32 %v656, %v656
    %v673 = vmul.f32 %v657, %v657
    %v674 = vmul.f32 %v658, %v658
    %v675 = vmul.f32 %v659, %v659
    %v676 = vmul.f32 %v660, %v660
    %v677 = vmul.f32 %v661, %v661
    %v678 = vmul.f32 %v662, %v662
    %v679 = vmul.f32 %v663, %v663
    %v680 = vmul.f32 %v664, %v664
    %v681 = vmul.f32 %v665, %v665
    %683 = vset.pattern.permute.xlu0 0
    %684 = vperm.xlu0 %683, %v602
    %v685 = vpop.permute.xlu0 %684
    %688 = vset.pattern.permute.xlu0 0
    %689 = vperm.xlu0 %688, %v603
    %v690 = vpop.permute.xlu0 %689
    %693 = vset.pattern.permute.xlu0 0
    %694 = vperm.xlu0 %693, %v604
    %v695 = vpop.permute.xlu0 %694
    %698 = vset.pattern.permute.xlu0 0
    %699 = vperm.xlu0 %698, %v605
    %v700 = vpop.permute.xlu0 %699
    %703 = vset.pattern.permute.xlu0 0
    %704 = vperm.xlu0 %703, %v606
    %v705 = vpop.permute.xlu0 %704
    %708 = vset.pattern.permute.xlu0 0
    %709 = vperm.xlu0 %708, %v607
    %v710 = vpop.permute.xlu0 %709
    %713 = vset.pattern.permute.xlu0 0
    %714 = vperm.xlu0 %713, %v608
    %v715 = vpop.permute.xlu0 %714
    %718 = vset.pattern.permute.xlu0 0
    %719 = vperm.xlu0 %718, %v609
    %v720 = vpop.permute.xlu0 %719
    %v722 = vsub.f32 %v685, %v175
    %v723 = vsub.f32 %v685, %v179
    %v724 = vsub.f32 %v690, %v175
    %v725 = vsub.f32 %v690, %v179
    %v726 = vsub.f32 %v695, %v175
    %v727 = vsub.f32 %v695, %v179
    %v728 = vsub.f32 %v700, %v175
    %v729 = vsub.f32 %v700, %v179
    %v730 = vsub.f32 %v705, %v175
    %v731 = vsub.f32 %v705, %v179
    %v732 = vsub.f32 %v710, %v175
    %v733 = vsub.f32 %v710, %v179
    %v734 = vsub.f32 %v715, %v175
    %v735 = vsub.f32 %v715, %v179
    %v736 = vsub.f32 %v720, %v175
    %v737 = vsub.f32 %v720, %v179
    %v738 = vmul.f32 %v722, %v722
    %v739 = vmul.f32 %v723, %v723
    %v740 = vmul.f32 %v724, %v724
    %v741 = vmul.f32 %v725, %v725
    %v742 = vmul.f32 %v726, %v726
    %v743 = vmul.f32 %v727, %v727
    %v744 = vmul.f32 %v728, %v728
    %v745 = vmul.f32 %v729, %v729
    %v746 = vmul.f32 %v730, %v730
    %v747 = vmul.f32 %v731, %v731
    %v748 = vmul.f32 %v732, %v732
    %v749 = vmul.f32 %v733, %v733
    %v750 = vmul.f32 %v734, %v734
    %v751 = vmul.f32 %v735, %v735
    %v752 = vmul.f32 %v736, %v736
    %v753 = vmul.f32 %v737, %v737
    %v754 = vadd.f32 %v666, %v738
    %v755 = vadd.f32 %v667, %v739
    %v756 = vadd.f32 %v668, %v740
    %v757 = vadd.f32 %v669, %v741
    %v758 = vadd.f32 %v670, %v742
    %v759 = vadd.f32 %v671, %v743
    %v760 = vadd.f32 %v672, %v744
    %v761 = vadd.f32 %v673, %v745
    %v762 = vadd.f32 %v674, %v746
    %v763 = vadd.f32 %v675, %v747
    %v764 = vadd.f32 %v676, %v748
    %v765 = vadd.f32 %v677, %v749
    %v766 = vadd.f32 %v678, %v750
    %v767 = vadd.f32 %v679, %v751
    %v768 = vadd.f32 %v680, %v752
    %v769 = vadd.f32 %v681, %v753
    %v770 = vsel %vm351, %v754, inf
    %771 = vmin.xlane.f32.xlu0 %v770
    %v772 = vpop.xlane.xlu0 %771
    %v773 = vsel %vm351, %v756, inf
    %774 = vmin.xlane.f32.xlu0 %v773
    %v775 = vpop.xlane.xlu0 %774
    %v776 = vsel %vm351, %v758, inf
    %777 = vmin.xlane.f32.xlu0 %v776
    %v778 = vpop.xlane.xlu0 %777
    %v779 = vsel %vm351, %v760, inf
    %780 = vmin.xlane.f32.xlu0 %v779
    %v781 = vpop.xlane.xlu0 %780
    %v782 = vsel %vm351, %v762, inf
    %783 = vmin.xlane.f32.xlu0 %v782
    %v784 = vpop.xlane.xlu0 %783
    %v785 = vsel %vm351, %v764, inf
    %786 = vmin.xlane.f32.xlu0 %v785
    %v787 = vpop.xlane.xlu0 %786
    %v788 = vsel %vm351, %v766, inf
    %789 = vmin.xlane.f32.xlu0 %v788
    %v790 = vpop.xlane.xlu0 %789
    %v791 = vsel %vm351, %v768, inf
    %792 = vmin.xlane.f32.xlu0 %v791
    %v793 = vpop.xlane.xlu0 %792
    %s794 = sld [smem:[#allocation2]]
    %s795 = sld [smem:[#allocation2 + $0x1]]
    %s796 = sld [smem:[#allocation2 + $0x2]]
    %s797 = sld [smem:[#allocation2 + $0x3]]
    %v798 = vstv %s794
    %vm799 = vcmp.ge.f32.partialorder %v593, %v798
    %vm800 = vcmp.ge.f32.partialorder %v594, %v798
    %vm801 = vcmp.ge.f32.partialorder %v595, %v798
    %vm802 = vcmp.ge.f32.partialorder %v596, %v798
    %vm803 = vcmp.ge.f32.partialorder %v597, %v798
    %vm804 = vcmp.ge.f32.partialorder %v598, %v798
    %vm805 = vcmp.ge.f32.partialorder %v599, %v798
    %vm806 = vcmp.ge.f32.partialorder %v600, %v798
    %v807 = vstv %s795
    %vm808 = vcmp.ge.f32.partialorder %v602, %v807
    %vm809 = vcmp.ge.f32.partialorder %v603, %v807
    %vm810 = vcmp.ge.f32.partialorder %v604, %v807
    %vm811 = vcmp.ge.f32.partialorder %v605, %v807
    %vm812 = vcmp.ge.f32.partialorder %v606, %v807
    %vm813 = vcmp.ge.f32.partialorder %v607, %v807
    %vm814 = vcmp.ge.f32.partialorder %v608, %v807
    %vm815 = vcmp.ge.f32.partialorder %v609, %v807
    %vm816 = vmand %vm799, %vm808
    %vm817 = vmand %vm800, %vm809
    %vm818 = vmand %vm801, %vm810
    %vm819 = vmand %vm802, %vm811
    %vm820 = vmand %vm803, %vm812
    %vm821 = vmand %vm804, %vm813
    %vm822 = vmand %vm805, %vm814
    %vm823 = vmand %vm806, %vm815
    %v824 = vstv %s796
    %vm825 = vcmp.le.f32.partialorder %v593, %v824
    %vm826 = vcmp.le.f32.partialorder %v594, %v824
    %vm827 = vcmp.le.f32.partialorder %v595, %v824
    %vm828 = vcmp.le.f32.partialorder %v596, %v824
    %vm829 = vcmp.le.f32.partialorder %v597, %v824
    %vm830 = vcmp.le.f32.partialorder %v598, %v824
    %vm831 = vcmp.le.f32.partialorder %v599, %v824
    %vm832 = vcmp.le.f32.partialorder %v600, %v824
    %vm833 = vmand %vm816, %vm825
    %vm834 = vmand %vm817, %vm826
    %vm835 = vmand %vm818, %vm827
    %vm836 = vmand %vm819, %vm828
    %vm837 = vmand %vm820, %vm829
    %vm838 = vmand %vm821, %vm830
    %vm839 = vmand %vm822, %vm831
    %vm840 = vmand %vm823, %vm832
    %v841 = vstv %s797
    %vm842 = vcmp.le.f32.partialorder %v602, %v841
    %vm843 = vcmp.le.f32.partialorder %v603, %v841
    %vm844 = vcmp.le.f32.partialorder %v604, %v841
    %vm845 = vcmp.le.f32.partialorder %v605, %v841
    %vm846 = vcmp.le.f32.partialorder %v606, %v841
    %vm847 = vcmp.le.f32.partialorder %v607, %v841
    %vm848 = vcmp.le.f32.partialorder %v608, %v841
    %vm849 = vcmp.le.f32.partialorder %v609, %v841
    %vm850 = vmand %vm833, %vm842
    %vm851 = vmand %vm834, %vm843
    %vm852 = vmand %vm835, %vm844
    %vm853 = vmand %vm836, %vm845
    %vm854 = vmand %vm837, %vm846
    %vm855 = vmand %vm838, %vm847
    %vm856 = vmand %vm839, %vm848
    %vm857 = vmand %vm840, %vm849
    %v858 = vsel %vm850, 1, 0
    %v859 = vsel %vm851, 1, 0
    %v860 = vsel %vm852, 1, 0
    %v861 = vsel %vm853, 1, 0
    %v862 = vsel %vm854, 1, 0
    %v863 = vsel %vm855, 1, 0
    %v864 = vsel %vm856, 1, 0
    %v865 = vsel %vm857, 1, 0
    %v866 = vcvt.s32.f32 %v858
    %v867 = vcvt.s32.f32 %v859
    %v868 = vcvt.s32.f32 %v860
    %v869 = vcvt.s32.f32 %v861
    %v870 = vcvt.s32.f32 %v862
    %v871 = vcvt.s32.f32 %v863
    %v872 = vcvt.s32.f32 %v864
    %v873 = vcvt.s32.f32 %v865
    %v874 = vmul.f32 %v772, %v866
    %v875 = vmul.f32 %v775, %v867
    %v876 = vmul.f32 %v778, %v868
    %v877 = vmul.f32 %v781, %v869
    %v878 = vmul.f32 %v784, %v870
    %v879 = vmul.f32 %v787, %v871
    %v880 = vmul.f32 %v790, %v872
    %v881 = vmul.f32 %v793, %v873
    %v882 = vadd.f32 %v584, %v874
    %v883 = vadd.f32 %v585, %v875
    %v884 = vadd.f32 %v586, %v876
    %v885 = vadd.f32 %v587, %v877
    %v886 = vadd.f32 %v588, %v878
    %v887 = vadd.f32 %v589, %v879
    %v888 = vadd.f32 %v590, %v880
    %v889 = vadd.f32 %v591, %v881
    %v890 = vsel %vm351, %v755, inf
    %891 = vmin.xlane.f32.xlu0 %v890
    %v892 = vpop.xlane.xlu0 %891
    %v893 = vsel %vm351, %v757, inf
    %894 = vmin.xlane.f32.xlu0 %v893
    %v895 = vpop.xlane.xlu0 %894
    %v896 = vsel %vm351, %v759, inf
    %897 = vmin.xlane.f32.xlu0 %v896
    %v898 = vpop.xlane.xlu0 %897
    %v899 = vsel %vm351, %v761, inf
    %900 = vmin.xlane.f32.xlu0 %v899
    %v901 = vpop.xlane.xlu0 %900
    %v902 = vsel %vm351, %v763, inf
    %903 = vmin.xlane.f32.xlu0 %v902
    %v904 = vpop.xlane.xlu0 %903
    %v905 = vsel %vm351, %v765, inf
    %906 = vmin.xlane.f32.xlu0 %v905
    %v907 = vpop.xlane.xlu0 %906
    %v908 = vsel %vm351, %v767, inf
    %909 = vmin.xlane.f32.xlu0 %v908
    %v910 = vpop.xlane.xlu0 %909
    %v911 = vsel %vm351, %v769, inf
    %912 = vmin.xlane.f32.xlu0 %v911
    %v913 = vpop.xlane.xlu0 %912
    %vm914 = vcmp.ge.f32.partialorder %v593, %v380
    %vm915 = vcmp.ge.f32.partialorder %v594, %v380
    %vm916 = vcmp.ge.f32.partialorder %v595, %v380
    %vm917 = vcmp.ge.f32.partialorder %v596, %v380
    %vm918 = vcmp.ge.f32.partialorder %v597, %v380
    %vm919 = vcmp.ge.f32.partialorder %v598, %v380
    %vm920 = vcmp.ge.f32.partialorder %v599, %v380
    %vm921 = vcmp.ge.f32.partialorder %v600, %v380
    %vm922 = vcmp.ge.f32.partialorder %v602, %v389
    %vm923 = vcmp.ge.f32.partialorder %v603, %v389
    %vm924 = vcmp.ge.f32.partialorder %v604, %v389
    %vm925 = vcmp.ge.f32.partialorder %v605, %v389
    %vm926 = vcmp.ge.f32.partialorder %v606, %v389
    %vm927 = vcmp.ge.f32.partialorder %v607, %v389
    %vm928 = vcmp.ge.f32.partialorder %v608, %v389
    %vm929 = vcmp.ge.f32.partialorder %v609, %v389
    %vm930 = vmand %vm914, %vm922
    %vm931 = vmand %vm915, %vm923
    %vm932 = vmand %vm916, %vm924
    %vm933 = vmand %vm917, %vm925
    %vm934 = vmand %vm918, %vm926
    %vm935 = vmand %vm919, %vm927
    %vm936 = vmand %vm920, %vm928
    %vm937 = vmand %vm921, %vm929
    %vm938 = vcmp.le.f32.partialorder %v593, %v406
    %vm939 = vcmp.le.f32.partialorder %v594, %v406
    %vm940 = vcmp.le.f32.partialorder %v595, %v406
    %vm941 = vcmp.le.f32.partialorder %v596, %v406
    %vm942 = vcmp.le.f32.partialorder %v597, %v406
    %vm943 = vcmp.le.f32.partialorder %v598, %v406
    %vm944 = vcmp.le.f32.partialorder %v599, %v406
    %vm945 = vcmp.le.f32.partialorder %v600, %v406
    %vm946 = vmand %vm930, %vm938
    %vm947 = vmand %vm931, %vm939
    %vm948 = vmand %vm932, %vm940
    %vm949 = vmand %vm933, %vm941
    %vm950 = vmand %vm934, %vm942
    %vm951 = vmand %vm935, %vm943
    %vm952 = vmand %vm936, %vm944
    %vm953 = vmand %vm937, %vm945
    %vm954 = vcmp.le.f32.partialorder %v602, %v423
    %vm955 = vcmp.le.f32.partialorder %v603, %v423
    %vm956 = vcmp.le.f32.partialorder %v604, %v423
    %vm957 = vcmp.le.f32.partialorder %v605, %v423
    %vm958 = vcmp.le.f32.partialorder %v606, %v423
    %vm959 = vcmp.le.f32.partialorder %v607, %v423
    %vm960 = vcmp.le.f32.partialorder %v608, %v423
    %vm961 = vcmp.le.f32.partialorder %v609, %v423
    %vm962 = vmand %vm946, %vm954
    %vm963 = vmand %vm947, %vm955
    %vm964 = vmand %vm948, %vm956
    %vm965 = vmand %vm949, %vm957
    %vm966 = vmand %vm950, %vm958
    %vm967 = vmand %vm951, %vm959
    %vm968 = vmand %vm952, %vm960
    %vm969 = vmand %vm953, %vm961
    %v970 = vsel %vm962, 1, 0
    %v971 = vsel %vm963, 1, 0
    %v972 = vsel %vm964, 1, 0
    %v973 = vsel %vm965, 1, 0
    %v974 = vsel %vm966, 1, 0
    %v975 = vsel %vm967, 1, 0
    %v976 = vsel %vm968, 1, 0
    %v977 = vsel %vm969, 1, 0
    %v978 = vcvt.s32.f32 %v970
    %v979 = vcvt.s32.f32 %v971
    %v980 = vcvt.s32.f32 %v972
    %v981 = vcvt.s32.f32 %v973
    %v982 = vcvt.s32.f32 %v974
    %v983 = vcvt.s32.f32 %v975
    %v984 = vcvt.s32.f32 %v976
    %v985 = vcvt.s32.f32 %v977
    %v986 = vmul.f32 %v892, %v978
    %v987 = vmul.f32 %v895, %v979
    %v988 = vmul.f32 %v898, %v980
    %v989 = vmul.f32 %v901, %v981
    %v990 = vmul.f32 %v904, %v982
    %v991 = vmul.f32 %v907, %v983
    %v992 = vmul.f32 %v910, %v984
    %v993 = vmul.f32 %v913, %v985
    %v994 = vadd.f32 %v882, %v986
    %v995 = vadd.f32 %v883, %v987
    %v996 = vadd.f32 %v884, %v988
    %v997 = vadd.f32 %v885, %v989
    %v998 = vadd.f32 %v886, %v990
    %v999 = vadd.f32 %v887, %v991
    %v1000 = vadd.f32 %v888, %v992
    %v1001 = vadd.f32 %v889, %v993
    %v1002 = vsel %vm230, %v755, inf
    %1003 = vmin.xlane.f32.xlu0 %v1002
    %v1004 = vpop.xlane.xlu0 %1003
    %v1005 = vsel %vm230, %v757, inf
    %1006 = vmin.xlane.f32.xlu0 %v1005
    %v1007 = vpop.xlane.xlu0 %1006
    %v1008 = vsel %vm230, %v759, inf
    %1009 = vmin.xlane.f32.xlu0 %v1008
    %v1010 = vpop.xlane.xlu0 %1009
    %v1011 = vsel %vm230, %v761, inf
    %1012 = vmin.xlane.f32.xlu0 %v1011
    %v1013 = vpop.xlane.xlu0 %1012
    %v1014 = vsel %vm230, %v763, inf
    %1015 = vmin.xlane.f32.xlu0 %v1014
    %v1016 = vpop.xlane.xlu0 %1015
    %v1017 = vsel %vm230, %v765, inf
    %1018 = vmin.xlane.f32.xlu0 %v1017
    %v1019 = vpop.xlane.xlu0 %1018
    %v1020 = vsel %vm230, %v767, inf
    %1021 = vmin.xlane.f32.xlu0 %v1020
    %v1022 = vpop.xlane.xlu0 %1021
    %v1023 = vsel %vm230, %v769, inf
    %1024 = vmin.xlane.f32.xlu0 %v1023
    %v1025 = vpop.xlane.xlu0 %1024
    %vm1026 = vcmp.ge.f32.partialorder %v593, %v500
    %vm1027 = vcmp.ge.f32.partialorder %v594, %v500
    %vm1028 = vcmp.ge.f32.partialorder %v595, %v500
    %vm1029 = vcmp.ge.f32.partialorder %v596, %v500
    %vm1030 = vcmp.ge.f32.partialorder %v597, %v500
    %vm1031 = vcmp.ge.f32.partialorder %v598, %v500
    %vm1032 = vcmp.ge.f32.partialorder %v599, %v500
    %vm1033 = vcmp.ge.f32.partialorder %v600, %v500
    %vm1034 = vcmp.ge.f32.partialorder %v602, %v509
    %vm1035 = vcmp.ge.f32.partialorder %v603, %v509
    %vm1036 = vcmp.ge.f32.partialorder %v604, %v509
    %vm1037 = vcmp.ge.f32.partialorder %v605, %v509
    %vm1038 = vcmp.ge.f32.partialorder %v606, %v509
    %vm1039 = vcmp.ge.f32.partialorder %v607, %v509
    %vm1040 = vcmp.ge.f32.partialorder %v608, %v509
    %vm1041 = vcmp.ge.f32.partialorder %v609, %v509
    %vm1042 = vmand %vm1026, %vm1034
    %vm1043 = vmand %vm1027, %vm1035
    %vm1044 = vmand %vm1028, %vm1036
    %vm1045 = vmand %vm1029, %vm1037
    %vm1046 = vmand %vm1030, %vm1038
    %vm1047 = vmand %vm1031, %vm1039
    %vm1048 = vmand %vm1032, %vm1040
    %vm1049 = vmand %vm1033, %vm1041
    %vm1050 = vcmp.le.f32.partialorder %v593, %v526
    %vm1051 = vcmp.le.f32.partialorder %v594, %v526
    %vm1052 = vcmp.le.f32.partialorder %v595, %v526
    %vm1053 = vcmp.le.f32.partialorder %v596, %v526
    %vm1054 = vcmp.le.f32.partialorder %v597, %v526
    %vm1055 = vcmp.le.f32.partialorder %v598, %v526
    %vm1056 = vcmp.le.f32.partialorder %v599, %v526
    %vm1057 = vcmp.le.f32.partialorder %v600, %v526
    %vm1058 = vmand %vm1042, %vm1050
    %vm1059 = vmand %vm1043, %vm1051
    %vm1060 = vmand %vm1044, %vm1052
    %vm1061 = vmand %vm1045, %vm1053
    %vm1062 = vmand %vm1046, %vm1054
    %vm1063 = vmand %vm1047, %vm1055
    %vm1064 = vmand %vm1048, %vm1056
    %vm1065 = vmand %vm1049, %vm1057
    %vm1066 = vcmp.le.f32.partialorder %v602, %v543
    %vm1067 = vcmp.le.f32.partialorder %v603, %v543
    %vm1068 = vcmp.le.f32.partialorder %v604, %v543
    %vm1069 = vcmp.le.f32.partialorder %v605, %v543
    %vm1070 = vcmp.le.f32.partialorder %v606, %v543
    %vm1071 = vcmp.le.f32.partialorder %v607, %v543
    %vm1072 = vcmp.le.f32.partialorder %v608, %v543
    %vm1073 = vcmp.le.f32.partialorder %v609, %v543
    %vm1074 = vmand %vm1058, %vm1066
    %vm1075 = vmand %vm1059, %vm1067
    %vm1076 = vmand %vm1060, %vm1068
    %vm1077 = vmand %vm1061, %vm1069
    %vm1078 = vmand %vm1062, %vm1070
    %vm1079 = vmand %vm1063, %vm1071
    %vm1080 = vmand %vm1064, %vm1072
    %vm1081 = vmand %vm1065, %vm1073
    %v1082 = vsel %vm1074, 1, 0
    %v1083 = vsel %vm1075, 1, 0
    %v1084 = vsel %vm1076, 1, 0
    %v1085 = vsel %vm1077, 1, 0
    %v1086 = vsel %vm1078, 1, 0
    %v1087 = vsel %vm1079, 1, 0
    %v1088 = vsel %vm1080, 1, 0
    %v1089 = vsel %vm1081, 1, 0
    %v1090 = vcvt.s32.f32 %v1082
    %v1091 = vcvt.s32.f32 %v1083
    %v1092 = vcvt.s32.f32 %v1084
    %v1093 = vcvt.s32.f32 %v1085
    %v1094 = vcvt.s32.f32 %v1086
    %v1095 = vcvt.s32.f32 %v1087
    %v1096 = vcvt.s32.f32 %v1088
    %v1097 = vcvt.s32.f32 %v1089
    %v1098 = vmul.f32 %v1004, %v1090
    %v1099 = vmul.f32 %v1007, %v1091
    %v1100 = vmul.f32 %v1010, %v1092
    %v1101 = vmul.f32 %v1013, %v1093
    %v1102 = vmul.f32 %v1016, %v1094
    %v1103 = vmul.f32 %v1019, %v1095
    %v1104 = vmul.f32 %v1022, %v1096
    %v1105 = vmul.f32 %v1025, %v1097
    %v1106 = vadd.f32 %v994, %v1098
    %v1107 = vadd.f32 %v995, %v1099
    %v1108 = vadd.f32 %v996, %v1100
    %v1109 = vadd.f32 %v997, %v1101
    %v1110 = vadd.f32 %v998, %v1102
    %v1111 = vadd.f32 %v999, %v1103
    %v1112 = vadd.f32 %v1000, %v1104
    %v1113 = vadd.f32 %v1001, %v1105
    %s1114 = scalar_lea.vmem %s0, 256
    %v1115 = vld [vmem:[%s1114] sm:$0xff]
    %v1116 = vld [vmem:[%s1114 + $0x8] sm:$0xff]
    %v1117 = vld [vmem:[%s1114 + $0x10] sm:$0xff]
    %v1118 = vld [vmem:[%s1114 + $0x18] sm:$0xff]
    %v1119 = vld [vmem:[%s1114 + $0x20] sm:$0xff]
    %v1120 = vld [vmem:[%s1114 + $0x28] sm:$0xff]
    %v1121 = vld [vmem:[%s1114 + $0x30] sm:$0xff]
    %v1122 = vld [vmem:[%s1114 + $0x38] sm:$0xff]
    %s1123 = scalar_lea.vmem %s0, 320
    %v1124 = vld [vmem:[%s1123] sm:$0xff]
    %v1125 = vld [vmem:[%s1123 + $0x8] sm:$0xff]
    %v1126 = vld [vmem:[%s1123 + $0x10] sm:$0xff]
    %v1127 = vld [vmem:[%s1123 + $0x18] sm:$0xff]
    %v1128 = vld [vmem:[%s1123 + $0x20] sm:$0xff]
    %v1129 = vld [vmem:[%s1123 + $0x28] sm:$0xff]
    %v1130 = vld [vmem:[%s1123 + $0x30] sm:$0xff]
    %v1131 = vld [vmem:[%s1123 + $0x38] sm:$0xff]
    %1133 = vset.pattern.permute.xlu0 0
    %1134 = vperm.xlu0 %1133, %v1115
    %v1135 = vpop.permute.xlu0 %1134
    %1138 = vset.pattern.permute.xlu0 0
    %1139 = vperm.xlu0 %1138, %v1116
    %v1140 = vpop.permute.xlu0 %1139
    %1143 = vset.pattern.permute.xlu0 0
    %1144 = vperm.xlu0 %1143, %v1117
    %v1145 = vpop.permute.xlu0 %1144
    %1148 = vset.pattern.permute.xlu0 0
    %1149 = vperm.xlu0 %1148, %v1118
    %v1150 = vpop.permute.xlu0 %1149
    %1153 = vset.pattern.permute.xlu0 0
    %1154 = vperm.xlu0 %1153, %v1119
    %v1155 = vpop.permute.xlu0 %1154
    %1158 = vset.pattern.permute.xlu0 0
    %1159 = vperm.xlu0 %1158, %v1120
    %v1160 = vpop.permute.xlu0 %1159
    %1163 = vset.pattern.permute.xlu0 0
    %1164 = vperm.xlu0 %1163, %v1121
    %v1165 = vpop.permute.xlu0 %1164
    %1168 = vset.pattern.permute.xlu0 0
    %1169 = vperm.xlu0 %1168, %v1122
    %v1170 = vpop.permute.xlu0 %1169
    %v1172 = vsub.f32 %v1135, %v92
    %v1173 = vsub.f32 %v1135, %v96
    %v1174 = vsub.f32 %v1140, %v92
    %v1175 = vsub.f32 %v1140, %v96
    %v1176 = vsub.f32 %v1145, %v92
    %v1177 = vsub.f32 %v1145, %v96
    %v1178 = vsub.f32 %v1150, %v92
    %v1179 = vsub.f32 %v1150, %v96
    %v1180 = vsub.f32 %v1155, %v92
    %v1181 = vsub.f32 %v1155, %v96
    %v1182 = vsub.f32 %v1160, %v92
    %v1183 = vsub.f32 %v1160, %v96
    %v1184 = vsub.f32 %v1165, %v92
    %v1185 = vsub.f32 %v1165, %v96
    %v1186 = vsub.f32 %v1170, %v92
    %v1187 = vsub.f32 %v1170, %v96
    %v1188 = vmul.f32 %v1172, %v1172
    %v1189 = vmul.f32 %v1173, %v1173
    %v1190 = vmul.f32 %v1174, %v1174
    %v1191 = vmul.f32 %v1175, %v1175
    %v1192 = vmul.f32 %v1176, %v1176
    %v1193 = vmul.f32 %v1177, %v1177
    %v1194 = vmul.f32 %v1178, %v1178
    %v1195 = vmul.f32 %v1179, %v1179
    %v1196 = vmul.f32 %v1180, %v1180
    %v1197 = vmul.f32 %v1181, %v1181
    %v1198 = vmul.f32 %v1182, %v1182
    %v1199 = vmul.f32 %v1183, %v1183
    %v1200 = vmul.f32 %v1184, %v1184
    %v1201 = vmul.f32 %v1185, %v1185
    %v1202 = vmul.f32 %v1186, %v1186
    %v1203 = vmul.f32 %v1187, %v1187
    %1205 = vset.pattern.permute.xlu0 0
    %1206 = vperm.xlu0 %1205, %v1124
    %v1207 = vpop.permute.xlu0 %1206
    %1210 = vset.pattern.permute.xlu0 0
    %1211 = vperm.xlu0 %1210, %v1125
    %v1212 = vpop.permute.xlu0 %1211
    %1215 = vset.pattern.permute.xlu0 0
    %1216 = vperm.xlu0 %1215, %v1126
    %v1217 = vpop.permute.xlu0 %1216
    %1220 = vset.pattern.permute.xlu0 0
    %1221 = vperm.xlu0 %1220, %v1127
    %v1222 = vpop.permute.xlu0 %1221
    %1225 = vset.pattern.permute.xlu0 0
    %1226 = vperm.xlu0 %1225, %v1128
    %v1227 = vpop.permute.xlu0 %1226
    %1230 = vset.pattern.permute.xlu0 0
    %1231 = vperm.xlu0 %1230, %v1129
    %v1232 = vpop.permute.xlu0 %1231
    %1235 = vset.pattern.permute.xlu0 0
    %1236 = vperm.xlu0 %1235, %v1130
    %v1237 = vpop.permute.xlu0 %1236
    %1240 = vset.pattern.permute.xlu0 0
    %1241 = vperm.xlu0 %1240, %v1131
    %v1242 = vpop.permute.xlu0 %1241
    %v1244 = vsub.f32 %v1207, %v175
    %v1245 = vsub.f32 %v1207, %v179
    %v1246 = vsub.f32 %v1212, %v175
    %v1247 = vsub.f32 %v1212, %v179
    %v1248 = vsub.f32 %v1217, %v175
    %v1249 = vsub.f32 %v1217, %v179
    %v1250 = vsub.f32 %v1222, %v175
    %v1251 = vsub.f32 %v1222, %v179
    %v1252 = vsub.f32 %v1227, %v175
    %v1253 = vsub.f32 %v1227, %v179
    %v1254 = vsub.f32 %v1232, %v175
    %v1255 = vsub.f32 %v1232, %v179
    %v1256 = vsub.f32 %v1237, %v175
    %v1257 = vsub.f32 %v1237, %v179
    %v1258 = vsub.f32 %v1242, %v175
    %v1259 = vsub.f32 %v1242, %v179
    %v1260 = vmul.f32 %v1244, %v1244
    %v1261 = vmul.f32 %v1245, %v1245
    %v1262 = vmul.f32 %v1246, %v1246
    %v1263 = vmul.f32 %v1247, %v1247
    %v1264 = vmul.f32 %v1248, %v1248
    %v1265 = vmul.f32 %v1249, %v1249
    %v1266 = vmul.f32 %v1250, %v1250
    %v1267 = vmul.f32 %v1251, %v1251
    %v1268 = vmul.f32 %v1252, %v1252
    %v1269 = vmul.f32 %v1253, %v1253
    %v1270 = vmul.f32 %v1254, %v1254
    %v1271 = vmul.f32 %v1255, %v1255
    %v1272 = vmul.f32 %v1256, %v1256
    %v1273 = vmul.f32 %v1257, %v1257
    %v1274 = vmul.f32 %v1258, %v1258
    %v1275 = vmul.f32 %v1259, %v1259
    %v1276 = vadd.f32 %v1188, %v1260
    %v1277 = vadd.f32 %v1189, %v1261
    %v1278 = vadd.f32 %v1190, %v1262
    %v1279 = vadd.f32 %v1191, %v1263
    %v1280 = vadd.f32 %v1192, %v1264
    %v1281 = vadd.f32 %v1193, %v1265
    %v1282 = vadd.f32 %v1194, %v1266
    %v1283 = vadd.f32 %v1195, %v1267
    %v1284 = vadd.f32 %v1196, %v1268
    %v1285 = vadd.f32 %v1197, %v1269
    %v1286 = vadd.f32 %v1198, %v1270
    %v1287 = vadd.f32 %v1199, %v1271
    %v1288 = vadd.f32 %v1200, %v1272
    %v1289 = vadd.f32 %v1201, %v1273
    %v1290 = vadd.f32 %v1202, %v1274
    %v1291 = vadd.f32 %v1203, %v1275
    %v1292 = vsel %vm351, %v1276, inf
    %1293 = vmin.xlane.f32.xlu0 %v1292
    %v1294 = vpop.xlane.xlu0 %1293
    %v1295 = vsel %vm351, %v1278, inf
    %1296 = vmin.xlane.f32.xlu0 %v1295
    %v1297 = vpop.xlane.xlu0 %1296
    %v1298 = vsel %vm351, %v1280, inf
    %1299 = vmin.xlane.f32.xlu0 %v1298
    %v1300 = vpop.xlane.xlu0 %1299
    %v1301 = vsel %vm351, %v1282, inf
    %1302 = vmin.xlane.f32.xlu0 %v1301
    %v1303 = vpop.xlane.xlu0 %1302
    %v1304 = vsel %vm351, %v1284, inf
    %1305 = vmin.xlane.f32.xlu0 %v1304
    %v1306 = vpop.xlane.xlu0 %1305
    %v1307 = vsel %vm351, %v1286, inf
    %1308 = vmin.xlane.f32.xlu0 %v1307
    %v1309 = vpop.xlane.xlu0 %1308
    %v1310 = vsel %vm351, %v1288, inf
    %1311 = vmin.xlane.f32.xlu0 %v1310
    %v1312 = vpop.xlane.xlu0 %1311
    %v1313 = vsel %vm351, %v1290, inf
    %1314 = vmin.xlane.f32.xlu0 %v1313
    %v1315 = vpop.xlane.xlu0 %1314
    %vm1316 = vcmp.ge.f32.partialorder %v1115, %v798
    %vm1317 = vcmp.ge.f32.partialorder %v1116, %v798
    %vm1318 = vcmp.ge.f32.partialorder %v1117, %v798
    %vm1319 = vcmp.ge.f32.partialorder %v1118, %v798
    %vm1320 = vcmp.ge.f32.partialorder %v1119, %v798
    %vm1321 = vcmp.ge.f32.partialorder %v1120, %v798
    %vm1322 = vcmp.ge.f32.partialorder %v1121, %v798
    %vm1323 = vcmp.ge.f32.partialorder %v1122, %v798
    %vm1324 = vcmp.ge.f32.partialorder %v1124, %v807
    %vm1325 = vcmp.ge.f32.partialorder %v1125, %v807
    %vm1326 = vcmp.ge.f32.partialorder %v1126, %v807
    %vm1327 = vcmp.ge.f32.partialorder %v1127, %v807
    %vm1328 = vcmp.ge.f32.partialorder %v1128, %v807
    %vm1329 = vcmp.ge.f32.partialorder %v1129, %v807
    %vm1330 = vcmp.ge.f32.partialorder %v1130, %v807
    %vm1331 = vcmp.ge.f32.partialorder %v1131, %v807
    %vm1332 = vmand %vm1316, %vm1324
    %vm1333 = vmand %vm1317, %vm1325
    %vm1334 = vmand %vm1318, %vm1326
    %vm1335 = vmand %vm1319, %vm1327
    %vm1336 = vmand %vm1320, %vm1328
    %vm1337 = vmand %vm1321, %vm1329
    %vm1338 = vmand %vm1322, %vm1330
    %vm1339 = vmand %vm1323, %vm1331
    %vm1340 = vcmp.le.f32.partialorder %v1115, %v824
    %vm1341 = vcmp.le.f32.partialorder %v1116, %v824
    %vm1342 = vcmp.le.f32.partialorder %v1117, %v824
    %vm1343 = vcmp.le.f32.partialorder %v1118, %v824
    %vm1344 = vcmp.le.f32.partialorder %v1119, %v824
    %vm1345 = vcmp.le.f32.partialorder %v1120, %v824
    %vm1346 = vcmp.le.f32.partialorder %v1121, %v824
    %vm1347 = vcmp.le.f32.partialorder %v1122, %v824
    %vm1348 = vmand %vm1332, %vm1340
    %vm1349 = vmand %vm1333, %vm1341
    %vm1350 = vmand %vm1334, %vm1342
    %vm1351 = vmand %vm1335, %vm1343
    %vm1352 = vmand %vm1336, %vm1344
    %vm1353 = vmand %vm1337, %vm1345
    %vm1354 = vmand %vm1338, %vm1346
    %vm1355 = vmand %vm1339, %vm1347
    %vm1356 = vcmp.le.f32.partialorder %v1124, %v841
    %vm1357 = vcmp.le.f32.partialorder %v1125, %v841
    %vm1358 = vcmp.le.f32.partialorder %v1126, %v841
    %vm1359 = vcmp.le.f32.partialorder %v1127, %v841
    %vm1360 = vcmp.le.f32.partialorder %v1128, %v841
    %vm1361 = vcmp.le.f32.partialorder %v1129, %v841
    %vm1362 = vcmp.le.f32.partialorder %v1130, %v841
    %vm1363 = vcmp.le.f32.partialorder %v1131, %v841
    %vm1364 = vmand %vm1348, %vm1356
    %vm1365 = vmand %vm1349, %vm1357
    %vm1366 = vmand %vm1350, %vm1358
    %vm1367 = vmand %vm1351, %vm1359
    %vm1368 = vmand %vm1352, %vm1360
    %vm1369 = vmand %vm1353, %vm1361
    %vm1370 = vmand %vm1354, %vm1362
    %vm1371 = vmand %vm1355, %vm1363
    %v1372 = vsel %vm1364, 1, 0
    %v1373 = vsel %vm1365, 1, 0
    %v1374 = vsel %vm1366, 1, 0
    %v1375 = vsel %vm1367, 1, 0
    %v1376 = vsel %vm1368, 1, 0
    %v1377 = vsel %vm1369, 1, 0
    %v1378 = vsel %vm1370, 1, 0
    %v1379 = vsel %vm1371, 1, 0
    %v1380 = vcvt.s32.f32 %v1372
    %v1381 = vcvt.s32.f32 %v1373
    %v1382 = vcvt.s32.f32 %v1374
    %v1383 = vcvt.s32.f32 %v1375
    %v1384 = vcvt.s32.f32 %v1376
    %v1385 = vcvt.s32.f32 %v1377
    %v1386 = vcvt.s32.f32 %v1378
    %v1387 = vcvt.s32.f32 %v1379
    %v1388 = vmul.f32 %v1294, %v1380
    %v1389 = vmul.f32 %v1297, %v1381
    %v1390 = vmul.f32 %v1300, %v1382
    %v1391 = vmul.f32 %v1303, %v1383
    %v1392 = vmul.f32 %v1306, %v1384
    %v1393 = vmul.f32 %v1309, %v1385
    %v1394 = vmul.f32 %v1312, %v1386
    %v1395 = vmul.f32 %v1315, %v1387
    %v1396 = vadd.f32 %v1106, %v1388
    %v1397 = vadd.f32 %v1107, %v1389
    %v1398 = vadd.f32 %v1108, %v1390
    %v1399 = vadd.f32 %v1109, %v1391
    %v1400 = vadd.f32 %v1110, %v1392
    %v1401 = vadd.f32 %v1111, %v1393
    %v1402 = vadd.f32 %v1112, %v1394
    %v1403 = vadd.f32 %v1113, %v1395
    %v1404 = vsel %vm230, %v1276, inf
    %1405 = vmin.xlane.f32.xlu0 %v1404
    %v1406 = vpop.xlane.xlu0 %1405
    %v1407 = vsel %vm230, %v1278, inf
    %1408 = vmin.xlane.f32.xlu0 %v1407
    %v1409 = vpop.xlane.xlu0 %1408
    %v1410 = vsel %vm230, %v1280, inf
    %1411 = vmin.xlane.f32.xlu0 %v1410
    %v1412 = vpop.xlane.xlu0 %1411
    %v1413 = vsel %vm230, %v1282, inf
    %1414 = vmin.xlane.f32.xlu0 %v1413
    %v1415 = vpop.xlane.xlu0 %1414
    %v1416 = vsel %vm230, %v1284, inf
    %1417 = vmin.xlane.f32.xlu0 %v1416
    %v1418 = vpop.xlane.xlu0 %1417
    %v1419 = vsel %vm230, %v1286, inf
    %1420 = vmin.xlane.f32.xlu0 %v1419
    %v1421 = vpop.xlane.xlu0 %1420
    %v1422 = vsel %vm230, %v1288, inf
    %1423 = vmin.xlane.f32.xlu0 %v1422
    %v1424 = vpop.xlane.xlu0 %1423
    %v1425 = vsel %vm230, %v1290, inf
    %1426 = vmin.xlane.f32.xlu0 %v1425
    %v1427 = vpop.xlane.xlu0 %1426
    %vm1428 = vcmp.ge.f32.partialorder %v1115, %v259
    %vm1429 = vcmp.ge.f32.partialorder %v1116, %v259
    %vm1430 = vcmp.ge.f32.partialorder %v1117, %v259
    %vm1431 = vcmp.ge.f32.partialorder %v1118, %v259
    %vm1432 = vcmp.ge.f32.partialorder %v1119, %v259
    %vm1433 = vcmp.ge.f32.partialorder %v1120, %v259
    %vm1434 = vcmp.ge.f32.partialorder %v1121, %v259
    %vm1435 = vcmp.ge.f32.partialorder %v1122, %v259
    %vm1436 = vcmp.ge.f32.partialorder %v1124, %v268
    %vm1437 = vcmp.ge.f32.partialorder %v1125, %v268
    %vm1438 = vcmp.ge.f32.partialorder %v1126, %v268
    %vm1439 = vcmp.ge.f32.partialorder %v1127, %v268
    %vm1440 = vcmp.ge.f32.partialorder %v1128, %v268
    %vm1441 = vcmp.ge.f32.partialorder %v1129, %v268
    %vm1442 = vcmp.ge.f32.partialorder %v1130, %v268
    %vm1443 = vcmp.ge.f32.partialorder %v1131, %v268
    %vm1444 = vmand %vm1428, %vm1436
    %vm1445 = vmand %vm1429, %vm1437
    %vm1446 = vmand %vm1430, %vm1438
    %vm1447 = vmand %vm1431, %vm1439
    %vm1448 = vmand %vm1432, %vm1440
    %vm1449 = vmand %vm1433, %vm1441
    %vm1450 = vmand %vm1434, %vm1442
    %vm1451 = vmand %vm1435, %vm1443
    %vm1452 = vcmp.le.f32.partialorder %v1115, %v285
    %vm1453 = vcmp.le.f32.partialorder %v1116, %v285
    %vm1454 = vcmp.le.f32.partialorder %v1117, %v285
    %vm1455 = vcmp.le.f32.partialorder %v1118, %v285
    %vm1456 = vcmp.le.f32.partialorder %v1119, %v285
    %vm1457 = vcmp.le.f32.partialorder %v1120, %v285
    %vm1458 = vcmp.le.f32.partialorder %v1121, %v285
    %vm1459 = vcmp.le.f32.partialorder %v1122, %v285
    %vm1460 = vmand %vm1444, %vm1452
    %vm1461 = vmand %vm1445, %vm1453
    %vm1462 = vmand %vm1446, %vm1454
    %vm1463 = vmand %vm1447, %vm1455
    %vm1464 = vmand %vm1448, %vm1456
    %vm1465 = vmand %vm1449, %vm1457
    %vm1466 = vmand %vm1450, %vm1458
    %vm1467 = vmand %vm1451, %vm1459
    %vm1468 = vcmp.le.f32.partialorder %v1124, %v302
    %vm1469 = vcmp.le.f32.partialorder %v1125, %v302
    %vm1470 = vcmp.le.f32.partialorder %v1126, %v302
    %vm1471 = vcmp.le.f32.partialorder %v1127, %v302
    %vm1472 = vcmp.le.f32.partialorder %v1128, %v302
    %vm1473 = vcmp.le.f32.partialorder %v1129, %v302
    %vm1474 = vcmp.le.f32.partialorder %v1130, %v302
    %vm1475 = vcmp.le.f32.partialorder %v1131, %v302
    %vm1476 = vmand %vm1460, %vm1468
    %vm1477 = vmand %vm1461, %vm1469
    %vm1478 = vmand %vm1462, %vm1470
    %vm1479 = vmand %vm1463, %vm1471
    %vm1480 = vmand %vm1464, %vm1472
    %vm1481 = vmand %vm1465, %vm1473
    %vm1482 = vmand %vm1466, %vm1474
    %vm1483 = vmand %vm1467, %vm1475
    %v1484 = vsel %vm1476, 1, 0
    %v1485 = vsel %vm1477, 1, 0
    %v1486 = vsel %vm1478, 1, 0
    %v1487 = vsel %vm1479, 1, 0
    %v1488 = vsel %vm1480, 1, 0
    %v1489 = vsel %vm1481, 1, 0
    %v1490 = vsel %vm1482, 1, 0
    %v1491 = vsel %vm1483, 1, 0
    %v1492 = vcvt.s32.f32 %v1484
    %v1493 = vcvt.s32.f32 %v1485
    %v1494 = vcvt.s32.f32 %v1486
    %v1495 = vcvt.s32.f32 %v1487
    %v1496 = vcvt.s32.f32 %v1488
    %v1497 = vcvt.s32.f32 %v1489
    %v1498 = vcvt.s32.f32 %v1490
    %v1499 = vcvt.s32.f32 %v1491
    %v1500 = vmul.f32 %v1406, %v1492
    %v1501 = vmul.f32 %v1409, %v1493
    %v1502 = vmul.f32 %v1412, %v1494
    %v1503 = vmul.f32 %v1415, %v1495
    %v1504 = vmul.f32 %v1418, %v1496
    %v1505 = vmul.f32 %v1421, %v1497
    %v1506 = vmul.f32 %v1424, %v1498
    %v1507 = vmul.f32 %v1427, %v1499
    %v1508 = vadd.f32 %v1396, %v1500
    %v1509 = vadd.f32 %v1397, %v1501
    %v1510 = vadd.f32 %v1398, %v1502
    %v1511 = vadd.f32 %v1399, %v1503
    %v1512 = vadd.f32 %v1400, %v1504
    %v1513 = vadd.f32 %v1401, %v1505
    %v1514 = vadd.f32 %v1402, %v1506
    %v1515 = vadd.f32 %v1403, %v1507
    %v1516 = vsel %vm230, %v1277, inf
    %1517 = vmin.xlane.f32.xlu0 %v1516
    %v1518 = vpop.xlane.xlu0 %1517
    %v1519 = vsel %vm230, %v1279, inf
    %1520 = vmin.xlane.f32.xlu0 %v1519
    %v1521 = vpop.xlane.xlu0 %1520
    %v1522 = vsel %vm230, %v1281, inf
    %1523 = vmin.xlane.f32.xlu0 %v1522
    %v1524 = vpop.xlane.xlu0 %1523
    %v1525 = vsel %vm230, %v1283, inf
    %1526 = vmin.xlane.f32.xlu0 %v1525
    %v1527 = vpop.xlane.xlu0 %1526
    %v1528 = vsel %vm230, %v1285, inf
    %1529 = vmin.xlane.f32.xlu0 %v1528
    %v1530 = vpop.xlane.xlu0 %1529
    %v1531 = vsel %vm230, %v1287, inf
    %1532 = vmin.xlane.f32.xlu0 %v1531
    %v1533 = vpop.xlane.xlu0 %1532
    %v1534 = vsel %vm230, %v1289, inf
    %1535 = vmin.xlane.f32.xlu0 %v1534
    %v1536 = vpop.xlane.xlu0 %1535
    %v1537 = vsel %vm230, %v1291, inf
    %1538 = vmin.xlane.f32.xlu0 %v1537
    %v1539 = vpop.xlane.xlu0 %1538
    %vm1540 = vcmp.ge.f32.partialorder %v1115, %v500
    %vm1541 = vcmp.ge.f32.partialorder %v1116, %v500
    %vm1542 = vcmp.ge.f32.partialorder %v1117, %v500
    %vm1543 = vcmp.ge.f32.partialorder %v1118, %v500
    %vm1544 = vcmp.ge.f32.partialorder %v1119, %v500
    %vm1545 = vcmp.ge.f32.partialorder %v1120, %v500
    %vm1546 = vcmp.ge.f32.partialorder %v1121, %v500
    %vm1547 = vcmp.ge.f32.partialorder %v1122, %v500
    %vm1548 = vcmp.ge.f32.partialorder %v1124, %v509
    %vm1549 = vcmp.ge.f32.partialorder %v1125, %v509
    %vm1550 = vcmp.ge.f32.partialorder %v1126, %v509
    %vm1551 = vcmp.ge.f32.partialorder %v1127, %v509
    %vm1552 = vcmp.ge.f32.partialorder %v1128, %v509
    %vm1553 = vcmp.ge.f32.partialorder %v1129, %v509
    %vm1554 = vcmp.ge.f32.partialorder %v1130, %v509
    %vm1555 = vcmp.ge.f32.partialorder %v1131, %v509
    %vm1556 = vmand %vm1540, %vm1548
    %vm1557 = vmand %vm1541, %vm1549
    %vm1558 = vmand %vm1542, %vm1550
    %vm1559 = vmand %vm1543, %vm1551
    %vm1560 = vmand %vm1544, %vm1552
    %vm1561 = vmand %vm1545, %vm1553
    %vm1562 = vmand %vm1546, %vm1554
    %vm1563 = vmand %vm1547, %vm1555
    %vm1564 = vcmp.le.f32.partialorder %v1115, %v526
    %vm1565 = vcmp.le.f32.partialorder %v1116, %v526
    %vm1566 = vcmp.le.f32.partialorder %v1117, %v526
    %vm1567 = vcmp.le.f32.partialorder %v1118, %v526
    %vm1568 = vcmp.le.f32.partialorder %v1119, %v526
    %vm1569 = vcmp.le.f32.partialorder %v1120, %v526
    %vm1570 = vcmp.le.f32.partialorder %v1121, %v526
    %vm1571 = vcmp.le.f32.partialorder %v1122, %v526
    %vm1572 = vmand %vm1556, %vm1564
    %vm1573 = vmand %vm1557, %vm1565
    %vm1574 = vmand %vm1558, %vm1566
    %vm1575 = vmand %vm1559, %vm1567
    %vm1576 = vmand %vm1560, %vm1568
    %vm1577 = vmand %vm1561, %vm1569
    %vm1578 = vmand %vm1562, %vm1570
    %vm1579 = vmand %vm1563, %vm1571
    %vm1580 = vcmp.le.f32.partialorder %v1124, %v543
    %vm1581 = vcmp.le.f32.partialorder %v1125, %v543
    %vm1582 = vcmp.le.f32.partialorder %v1126, %v543
    %vm1583 = vcmp.le.f32.partialorder %v1127, %v543
    %vm1584 = vcmp.le.f32.partialorder %v1128, %v543
    %vm1585 = vcmp.le.f32.partialorder %v1129, %v543
    %vm1586 = vcmp.le.f32.partialorder %v1130, %v543
    %vm1587 = vcmp.le.f32.partialorder %v1131, %v543
    %vm1588 = vmand %vm1572, %vm1580
    %vm1589 = vmand %vm1573, %vm1581
    %vm1590 = vmand %vm1574, %vm1582
    %vm1591 = vmand %vm1575, %vm1583
    %vm1592 = vmand %vm1576, %vm1584
    %vm1593 = vmand %vm1577, %vm1585
    %vm1594 = vmand %vm1578, %vm1586
    %vm1595 = vmand %vm1579, %vm1587
    %v1596 = vsel %vm1588, 1, 0
    %v1597 = vsel %vm1589, 1, 0
    %v1598 = vsel %vm1590, 1, 0
    %v1599 = vsel %vm1591, 1, 0
    %v1600 = vsel %vm1592, 1, 0
    %v1601 = vsel %vm1593, 1, 0
    %v1602 = vsel %vm1594, 1, 0
    %v1603 = vsel %vm1595, 1, 0
    %v1604 = vcvt.s32.f32 %v1596
    %v1605 = vcvt.s32.f32 %v1597
    %v1606 = vcvt.s32.f32 %v1598
    %v1607 = vcvt.s32.f32 %v1599
    %v1608 = vcvt.s32.f32 %v1600
    %v1609 = vcvt.s32.f32 %v1601
    %v1610 = vcvt.s32.f32 %v1602
    %v1611 = vcvt.s32.f32 %v1603
    %v1612 = vmul.f32 %v1518, %v1604
    %v1613 = vmul.f32 %v1521, %v1605
    %v1614 = vmul.f32 %v1524, %v1606
    %v1615 = vmul.f32 %v1527, %v1607
    %v1616 = vmul.f32 %v1530, %v1608
    %v1617 = vmul.f32 %v1533, %v1609
    %v1618 = vmul.f32 %v1536, %v1610
    %v1619 = vmul.f32 %v1539, %v1611
    %v1620 = vadd.f32 %v1508, %v1612
    %v1621 = vadd.f32 %v1509, %v1613
    %v1622 = vadd.f32 %v1510, %v1614
    %v1623 = vadd.f32 %v1511, %v1615
    %v1624 = vadd.f32 %v1512, %v1616
    %v1625 = vadd.f32 %v1513, %v1617
    %v1626 = vadd.f32 %v1514, %v1618
    %v1627 = vadd.f32 %v1515, %v1619
    %s1628 = scalar_lea.vmem %s0, 384
    %v1629 = vld [vmem:[%s1628] sm:$0xff]
    %v1630 = vld [vmem:[%s1628 + $0x8] sm:$0xff]
    %v1631 = vld [vmem:[%s1628 + $0x10] sm:$0xff]
    %v1632 = vld [vmem:[%s1628 + $0x18] sm:$0xff]
    %v1633 = vld [vmem:[%s1628 + $0x20] sm:$0xff]
    %v1634 = vld [vmem:[%s1628 + $0x28] sm:$0xff]
    %v1635 = vld [vmem:[%s1628 + $0x30] sm:$0xff]
    %v1636 = vld [vmem:[%s1628 + $0x38] sm:$0xff]
    %s1637 = scalar_lea.vmem %s0, 448
    %v1638 = vld [vmem:[%s1637] sm:$0xff]
    %v1639 = vld [vmem:[%s1637 + $0x8] sm:$0xff]
    %v1640 = vld [vmem:[%s1637 + $0x10] sm:$0xff]
    %v1641 = vld [vmem:[%s1637 + $0x18] sm:$0xff]
    %v1642 = vld [vmem:[%s1637 + $0x20] sm:$0xff]
    %v1643 = vld [vmem:[%s1637 + $0x28] sm:$0xff]
    %v1644 = vld [vmem:[%s1637 + $0x30] sm:$0xff]
    %v1645 = vld [vmem:[%s1637 + $0x38] sm:$0xff]
    %1647 = vset.pattern.permute.xlu0 0
    %1648 = vperm.xlu0 %1647, %v1629
    %v1649 = vpop.permute.xlu0 %1648
    %1652 = vset.pattern.permute.xlu0 0
    %1653 = vperm.xlu0 %1652, %v1630
    %v1654 = vpop.permute.xlu0 %1653
    %1657 = vset.pattern.permute.xlu0 0
    %1658 = vperm.xlu0 %1657, %v1631
    %v1659 = vpop.permute.xlu0 %1658
    %1662 = vset.pattern.permute.xlu0 0
    %1663 = vperm.xlu0 %1662, %v1632
    %v1664 = vpop.permute.xlu0 %1663
    %1667 = vset.pattern.permute.xlu0 0
    %1668 = vperm.xlu0 %1667, %v1633
    %v1669 = vpop.permute.xlu0 %1668
    %1672 = vset.pattern.permute.xlu0 0
    %1673 = vperm.xlu0 %1672, %v1634
    %v1674 = vpop.permute.xlu0 %1673
    %1677 = vset.pattern.permute.xlu0 0
    %1678 = vperm.xlu0 %1677, %v1635
    %v1679 = vpop.permute.xlu0 %1678
    %1682 = vset.pattern.permute.xlu0 0
    %1683 = vperm.xlu0 %1682, %v1636
    %v1684 = vpop.permute.xlu0 %1683
    %v1686 = vsub.f32 %v1649, %v92
    %v1687 = vsub.f32 %v1649, %v96
    %v1688 = vsub.f32 %v1654, %v92
    %v1689 = vsub.f32 %v1654, %v96
    %v1690 = vsub.f32 %v1659, %v92
    %v1691 = vsub.f32 %v1659, %v96
    %v1692 = vsub.f32 %v1664, %v92
    %v1693 = vsub.f32 %v1664, %v96
    %v1694 = vsub.f32 %v1669, %v92
    %v1695 = vsub.f32 %v1669, %v96
    %v1696 = vsub.f32 %v1674, %v92
    %v1697 = vsub.f32 %v1674, %v96
    %v1698 = vsub.f32 %v1679, %v92
    %v1699 = vsub.f32 %v1679, %v96
    %v1700 = vsub.f32 %v1684, %v92
    %v1701 = vsub.f32 %v1684, %v96
    %v1702 = vmul.f32 %v1686, %v1686
    %v1703 = vmul.f32 %v1687, %v1687
    %v1704 = vmul.f32 %v1688, %v1688
    %v1705 = vmul.f32 %v1689, %v1689
    %v1706 = vmul.f32 %v1690, %v1690
    %v1707 = vmul.f32 %v1691, %v1691
    %v1708 = vmul.f32 %v1692, %v1692
    %v1709 = vmul.f32 %v1693, %v1693
    %v1710 = vmul.f32 %v1694, %v1694
    %v1711 = vmul.f32 %v1695, %v1695
    %v1712 = vmul.f32 %v1696, %v1696
    %v1713 = vmul.f32 %v1697, %v1697
    %v1714 = vmul.f32 %v1698, %v1698
    %v1715 = vmul.f32 %v1699, %v1699
    %v1716 = vmul.f32 %v1700, %v1700
    %v1717 = vmul.f32 %v1701, %v1701
    %1719 = vset.pattern.permute.xlu0 0
    %1720 = vperm.xlu0 %1719, %v1638
    %v1721 = vpop.permute.xlu0 %1720
    %1724 = vset.pattern.permute.xlu0 0
    %1725 = vperm.xlu0 %1724, %v1639
    %v1726 = vpop.permute.xlu0 %1725
    %1729 = vset.pattern.permute.xlu0 0
    %1730 = vperm.xlu0 %1729, %v1640
    %v1731 = vpop.permute.xlu0 %1730
    %1734 = vset.pattern.permute.xlu0 0
    %1735 = vperm.xlu0 %1734, %v1641
    %v1736 = vpop.permute.xlu0 %1735
    %1739 = vset.pattern.permute.xlu0 0
    %1740 = vperm.xlu0 %1739, %v1642
    %v1741 = vpop.permute.xlu0 %1740
    %1744 = vset.pattern.permute.xlu0 0
    %1745 = vperm.xlu0 %1744, %v1643
    %v1746 = vpop.permute.xlu0 %1745
    %1749 = vset.pattern.permute.xlu0 0
    %1750 = vperm.xlu0 %1749, %v1644
    %v1751 = vpop.permute.xlu0 %1750
    %1754 = vset.pattern.permute.xlu0 0
    %1755 = vperm.xlu0 %1754, %v1645
    %v1756 = vpop.permute.xlu0 %1755
    %v1758 = vsub.f32 %v1721, %v175
    %v1759 = vsub.f32 %v1721, %v179
    %v1760 = vsub.f32 %v1726, %v175
    %v1761 = vsub.f32 %v1726, %v179
    %v1762 = vsub.f32 %v1731, %v175
    %v1763 = vsub.f32 %v1731, %v179
    %v1764 = vsub.f32 %v1736, %v175
    %v1765 = vsub.f32 %v1736, %v179
    %v1766 = vsub.f32 %v1741, %v175
    %v1767 = vsub.f32 %v1741, %v179
    %v1768 = vsub.f32 %v1746, %v175
    %v1769 = vsub.f32 %v1746, %v179
    %v1770 = vsub.f32 %v1751, %v175
    %v1771 = vsub.f32 %v1751, %v179
    %v1772 = vsub.f32 %v1756, %v175
    %v1773 = vsub.f32 %v1756, %v179
    %v1774 = vmul.f32 %v1758, %v1758
    %v1775 = vmul.f32 %v1759, %v1759
    %v1776 = vmul.f32 %v1760, %v1760
    %v1777 = vmul.f32 %v1761, %v1761
    %v1778 = vmul.f32 %v1762, %v1762
    %v1779 = vmul.f32 %v1763, %v1763
    %v1780 = vmul.f32 %v1764, %v1764
    %v1781 = vmul.f32 %v1765, %v1765
    %v1782 = vmul.f32 %v1766, %v1766
    %v1783 = vmul.f32 %v1767, %v1767
    %v1784 = vmul.f32 %v1768, %v1768
    %v1785 = vmul.f32 %v1769, %v1769
    %v1786 = vmul.f32 %v1770, %v1770
    %v1787 = vmul.f32 %v1771, %v1771
    %v1788 = vmul.f32 %v1772, %v1772
    %v1789 = vmul.f32 %v1773, %v1773
    %v1790 = vadd.f32 %v1702, %v1774
    %v1791 = vadd.f32 %v1703, %v1775
    %v1792 = vadd.f32 %v1704, %v1776
    %v1793 = vadd.f32 %v1705, %v1777
    %v1794 = vadd.f32 %v1706, %v1778
    %v1795 = vadd.f32 %v1707, %v1779
    %v1796 = vadd.f32 %v1708, %v1780
    %v1797 = vadd.f32 %v1709, %v1781
    %v1798 = vadd.f32 %v1710, %v1782
    %v1799 = vadd.f32 %v1711, %v1783
    %v1800 = vadd.f32 %v1712, %v1784
    %v1801 = vadd.f32 %v1713, %v1785
    %v1802 = vadd.f32 %v1714, %v1786
    %v1803 = vadd.f32 %v1715, %v1787
    %v1804 = vadd.f32 %v1716, %v1788
    %v1805 = vadd.f32 %v1717, %v1789
    %v1806 = vsel %vm351, %v1790, inf
    %1807 = vmin.xlane.f32.xlu0 %v1806
    %v1808 = vpop.xlane.xlu0 %1807
    %v1809 = vsel %vm351, %v1792, inf
    %1810 = vmin.xlane.f32.xlu0 %v1809
    %v1811 = vpop.xlane.xlu0 %1810
    %v1812 = vsel %vm351, %v1794, inf
    %1813 = vmin.xlane.f32.xlu0 %v1812
    %v1814 = vpop.xlane.xlu0 %1813
    %v1815 = vsel %vm351, %v1796, inf
    %1816 = vmin.xlane.f32.xlu0 %v1815
    %v1817 = vpop.xlane.xlu0 %1816
    %v1818 = vsel %vm351, %v1798, inf
    %1819 = vmin.xlane.f32.xlu0 %v1818
    %v1820 = vpop.xlane.xlu0 %1819
    %v1821 = vsel %vm351, %v1800, inf
    %1822 = vmin.xlane.f32.xlu0 %v1821
    %v1823 = vpop.xlane.xlu0 %1822
    %v1824 = vsel %vm351, %v1802, inf
    %1825 = vmin.xlane.f32.xlu0 %v1824
    %v1826 = vpop.xlane.xlu0 %1825
    %v1827 = vsel %vm351, %v1804, inf
    %1828 = vmin.xlane.f32.xlu0 %v1827
    %v1829 = vpop.xlane.xlu0 %1828
    %vm1830 = vcmp.ge.f32.partialorder %v1629, %v798
    %vm1831 = vcmp.ge.f32.partialorder %v1630, %v798
    %vm1832 = vcmp.ge.f32.partialorder %v1631, %v798
    %vm1833 = vcmp.ge.f32.partialorder %v1632, %v798
    %vm1834 = vcmp.ge.f32.partialorder %v1633, %v798
    %vm1835 = vcmp.ge.f32.partialorder %v1634, %v798
    %vm1836 = vcmp.ge.f32.partialorder %v1635, %v798
    %vm1837 = vcmp.ge.f32.partialorder %v1636, %v798
    %vm1838 = vcmp.ge.f32.partialorder %v1638, %v807
    %vm1839 = vcmp.ge.f32.partialorder %v1639, %v807
    %vm1840 = vcmp.ge.f32.partialorder %v1640, %v807
    %vm1841 = vcmp.ge.f32.partialorder %v1641, %v807
    %vm1842 = vcmp.ge.f32.partialorder %v1642, %v807
    %vm1843 = vcmp.ge.f32.partialorder %v1643, %v807
    %vm1844 = vcmp.ge.f32.partialorder %v1644, %v807
    %vm1845 = vcmp.ge.f32.partialorder %v1645, %v807
    %vm1846 = vmand %vm1830, %vm1838
    %vm1847 = vmand %vm1831, %vm1839
    %vm1848 = vmand %vm1832, %vm1840
    %vm1849 = vmand %vm1833, %vm1841
    %vm1850 = vmand %vm1834, %vm1842
    %vm1851 = vmand %vm1835, %vm1843
    %vm1852 = vmand %vm1836, %vm1844
    %vm1853 = vmand %vm1837, %vm1845
    %vm1854 = vcmp.le.f32.partialorder %v1629, %v824
    %vm1855 = vcmp.le.f32.partialorder %v1630, %v824
    %vm1856 = vcmp.le.f32.partialorder %v1631, %v824
    %vm1857 = vcmp.le.f32.partialorder %v1632, %v824
    %vm1858 = vcmp.le.f32.partialorder %v1633, %v824
    %vm1859 = vcmp.le.f32.partialorder %v1634, %v824
    %vm1860 = vcmp.le.f32.partialorder %v1635, %v824
    %vm1861 = vcmp.le.f32.partialorder %v1636, %v824
    %vm1862 = vmand %vm1846, %vm1854
    %vm1863 = vmand %vm1847, %vm1855
    %vm1864 = vmand %vm1848, %vm1856
    %vm1865 = vmand %vm1849, %vm1857
    %vm1866 = vmand %vm1850, %vm1858
    %vm1867 = vmand %vm1851, %vm1859
    %vm1868 = vmand %vm1852, %vm1860
    %vm1869 = vmand %vm1853, %vm1861
    %vm1870 = vcmp.le.f32.partialorder %v1638, %v841
    %vm1871 = vcmp.le.f32.partialorder %v1639, %v841
    %vm1872 = vcmp.le.f32.partialorder %v1640, %v841
    %vm1873 = vcmp.le.f32.partialorder %v1641, %v841
    %vm1874 = vcmp.le.f32.partialorder %v1642, %v841
    %vm1875 = vcmp.le.f32.partialorder %v1643, %v841
    %vm1876 = vcmp.le.f32.partialorder %v1644, %v841
    %vm1877 = vcmp.le.f32.partialorder %v1645, %v841
    %vm1878 = vmand %vm1862, %vm1870
    %vm1879 = vmand %vm1863, %vm1871
    %vm1880 = vmand %vm1864, %vm1872
    %vm1881 = vmand %vm1865, %vm1873
    %vm1882 = vmand %vm1866, %vm1874
    %vm1883 = vmand %vm1867, %vm1875
    %vm1884 = vmand %vm1868, %vm1876
    %vm1885 = vmand %vm1869, %vm1877
    %v1886 = vsel %vm1878, 1, 0
    %v1887 = vsel %vm1879, 1, 0
    %v1888 = vsel %vm1880, 1, 0
    %v1889 = vsel %vm1881, 1, 0
    %v1890 = vsel %vm1882, 1, 0
    %v1891 = vsel %vm1883, 1, 0
    %v1892 = vsel %vm1884, 1, 0
    %v1893 = vsel %vm1885, 1, 0
    %v1894 = vcvt.s32.f32 %v1886
    %v1895 = vcvt.s32.f32 %v1887
    %v1896 = vcvt.s32.f32 %v1888
    %v1897 = vcvt.s32.f32 %v1889
    %v1898 = vcvt.s32.f32 %v1890
    %v1899 = vcvt.s32.f32 %v1891
    %v1900 = vcvt.s32.f32 %v1892
    %v1901 = vcvt.s32.f32 %v1893
    %v1902 = vmul.f32 %v1808, %v1894
    %v1903 = vmul.f32 %v1811, %v1895
    %v1904 = vmul.f32 %v1814, %v1896
    %v1905 = vmul.f32 %v1817, %v1897
    %v1906 = vmul.f32 %v1820, %v1898
    %v1907 = vmul.f32 %v1823, %v1899
    %v1908 = vmul.f32 %v1826, %v1900
    %v1909 = vmul.f32 %v1829, %v1901
    %v1910 = vadd.f32 %v1620, %v1902
    %v1911 = vadd.f32 %v1621, %v1903
    %v1912 = vadd.f32 %v1622, %v1904
    %v1913 = vadd.f32 %v1623, %v1905
    %v1914 = vadd.f32 %v1624, %v1906
    %v1915 = vadd.f32 %v1625, %v1907
    %v1916 = vadd.f32 %v1626, %v1908
    %v1917 = vadd.f32 %v1627, %v1909
    %v1918 = vsel %vm230, %v1790, inf
    %1919 = vmin.xlane.f32.xlu0 %v1918
    %v1920 = vpop.xlane.xlu0 %1919
    %v1921 = vsel %vm230, %v1792, inf
    %1922 = vmin.xlane.f32.xlu0 %v1921
    %v1923 = vpop.xlane.xlu0 %1922
    %v1924 = vsel %vm230, %v1794, inf
    %1925 = vmin.xlane.f32.xlu0 %v1924
    %v1926 = vpop.xlane.xlu0 %1925
    %v1927 = vsel %vm230, %v1796, inf
    %1928 = vmin.xlane.f32.xlu0 %v1927
    %v1929 = vpop.xlane.xlu0 %1928
    %v1930 = vsel %vm230, %v1798, inf
    %1931 = vmin.xlane.f32.xlu0 %v1930
    %v1932 = vpop.xlane.xlu0 %1931
    %v1933 = vsel %vm230, %v1800, inf
    %1934 = vmin.xlane.f32.xlu0 %v1933
    %v1935 = vpop.xlane.xlu0 %1934
    %v1936 = vsel %vm230, %v1802, inf
    %1937 = vmin.xlane.f32.xlu0 %v1936
    %v1938 = vpop.xlane.xlu0 %1937
    %v1939 = vsel %vm230, %v1804, inf
    %1940 = vmin.xlane.f32.xlu0 %v1939
    %v1941 = vpop.xlane.xlu0 %1940
    %vm1942 = vcmp.ge.f32.partialorder %v1629, %v259
    %vm1943 = vcmp.ge.f32.partialorder %v1630, %v259
    %vm1944 = vcmp.ge.f32.partialorder %v1631, %v259
    %vm1945 = vcmp.ge.f32.partialorder %v1632, %v259
    %vm1946 = vcmp.ge.f32.partialorder %v1633, %v259
    %vm1947 = vcmp.ge.f32.partialorder %v1634, %v259
    %vm1948 = vcmp.ge.f32.partialorder %v1635, %v259
    %vm1949 = vcmp.ge.f32.partialorder %v1636, %v259
    %vm1950 = vcmp.ge.f32.partialorder %v1638, %v268
    %vm1951 = vcmp.ge.f32.partialorder %v1639, %v268
    %vm1952 = vcmp.ge.f32.partialorder %v1640, %v268
    %vm1953 = vcmp.ge.f32.partialorder %v1641, %v268
    %vm1954 = vcmp.ge.f32.partialorder %v1642, %v268
    %vm1955 = vcmp.ge.f32.partialorder %v1643, %v268
    %vm1956 = vcmp.ge.f32.partialorder %v1644, %v268
    %vm1957 = vcmp.ge.f32.partialorder %v1645, %v268
    %vm1958 = vmand %vm1942, %vm1950
    %vm1959 = vmand %vm1943, %vm1951
    %vm1960 = vmand %vm1944, %vm1952
    %vm1961 = vmand %vm1945, %vm1953
    %vm1962 = vmand %vm1946, %vm1954
    %vm1963 = vmand %vm1947, %vm1955
    %vm1964 = vmand %vm1948, %vm1956
    %vm1965 = vmand %vm1949, %vm1957
    %vm1966 = vcmp.le.f32.partialorder %v1629, %v285
    %vm1967 = vcmp.le.f32.partialorder %v1630, %v285
    %vm1968 = vcmp.le.f32.partialorder %v1631, %v285
    %vm1969 = vcmp.le.f32.partialorder %v1632, %v285
    %vm1970 = vcmp.le.f32.partialorder %v1633, %v285
    %vm1971 = vcmp.le.f32.partialorder %v1634, %v285
    %vm1972 = vcmp.le.f32.partialorder %v1635, %v285
    %vm1973 = vcmp.le.f32.partialorder %v1636, %v285
    %vm1974 = vmand %vm1958, %vm1966
    %vm1975 = vmand %vm1959, %vm1967
    %vm1976 = vmand %vm1960, %vm1968
    %vm1977 = vmand %vm1961, %vm1969
    %vm1978 = vmand %vm1962, %vm1970
    %vm1979 = vmand %vm1963, %vm1971
    %vm1980 = vmand %vm1964, %vm1972
    %vm1981 = vmand %vm1965, %vm1973
    %vm1982 = vcmp.le.f32.partialorder %v1638, %v302
    %vm1983 = vcmp.le.f32.partialorder %v1639, %v302
    %vm1984 = vcmp.le.f32.partialorder %v1640, %v302
    %vm1985 = vcmp.le.f32.partialorder %v1641, %v302
    %vm1986 = vcmp.le.f32.partialorder %v1642, %v302
    %vm1987 = vcmp.le.f32.partialorder %v1643, %v302
    %vm1988 = vcmp.le.f32.partialorder %v1644, %v302
    %vm1989 = vcmp.le.f32.partialorder %v1645, %v302
    %vm1990 = vmand %vm1974, %vm1982
    %vm1991 = vmand %vm1975, %vm1983
    %vm1992 = vmand %vm1976, %vm1984
    %vm1993 = vmand %vm1977, %vm1985
    %vm1994 = vmand %vm1978, %vm1986
    %vm1995 = vmand %vm1979, %vm1987
    %vm1996 = vmand %vm1980, %vm1988
    %vm1997 = vmand %vm1981, %vm1989
    %v1998 = vsel %vm1990, 1, 0
    %v1999 = vsel %vm1991, 1, 0
    %v2000 = vsel %vm1992, 1, 0
    %v2001 = vsel %vm1993, 1, 0
    %v2002 = vsel %vm1994, 1, 0
    %v2003 = vsel %vm1995, 1, 0
    %v2004 = vsel %vm1996, 1, 0
    %v2005 = vsel %vm1997, 1, 0
    %v2006 = vcvt.s32.f32 %v1998
    %v2007 = vcvt.s32.f32 %v1999
    %v2008 = vcvt.s32.f32 %v2000
    %v2009 = vcvt.s32.f32 %v2001
    %v2010 = vcvt.s32.f32 %v2002
    %v2011 = vcvt.s32.f32 %v2003
    %v2012 = vcvt.s32.f32 %v2004
    %v2013 = vcvt.s32.f32 %v2005
    %v2014 = vmul.f32 %v1920, %v2006
    %v2015 = vmul.f32 %v1923, %v2007
    %v2016 = vmul.f32 %v1926, %v2008
    %v2017 = vmul.f32 %v1929, %v2009
    %v2018 = vmul.f32 %v1932, %v2010
    %v2019 = vmul.f32 %v1935, %v2011
    %v2020 = vmul.f32 %v1938, %v2012
    %v2021 = vmul.f32 %v1941, %v2013
    %v2022 = vadd.f32 %v1910, %v2014
    %v2023 = vadd.f32 %v1911, %v2015
    %v2024 = vadd.f32 %v1912, %v2016
    %v2025 = vadd.f32 %v1913, %v2017
    %v2026 = vadd.f32 %v1914, %v2018
    %v2027 = vadd.f32 %v1915, %v2019
    %v2028 = vadd.f32 %v1916, %v2020
    %v2029 = vadd.f32 %v1917, %v2021
    %v2030 = vsel %vm351, %v1791, inf
    %2031 = vmin.xlane.f32.xlu0 %v2030
    %v2032 = vpop.xlane.xlu0 %2031
    %v2033 = vsel %vm351, %v1793, inf
    %2034 = vmin.xlane.f32.xlu0 %v2033
    %v2035 = vpop.xlane.xlu0 %2034
    %v2036 = vsel %vm351, %v1795, inf
    %2037 = vmin.xlane.f32.xlu0 %v2036
    %v2038 = vpop.xlane.xlu0 %2037
    %v2039 = vsel %vm351, %v1797, inf
    %2040 = vmin.xlane.f32.xlu0 %v2039
    %v2041 = vpop.xlane.xlu0 %2040
    %v2042 = vsel %vm351, %v1799, inf
    %2043 = vmin.xlane.f32.xlu0 %v2042
    %v2044 = vpop.xlane.xlu0 %2043
    %v2045 = vsel %vm351, %v1801, inf
    %2046 = vmin.xlane.f32.xlu0 %v2045
    %v2047 = vpop.xlane.xlu0 %2046
    %v2048 = vsel %vm351, %v1803, inf
    %2049 = vmin.xlane.f32.xlu0 %v2048
    %v2050 = vpop.xlane.xlu0 %2049
    %v2051 = vsel %vm351, %v1805, inf
    %2052 = vmin.xlane.f32.xlu0 %v2051
    %v2053 = vpop.xlane.xlu0 %2052
    %vm2054 = vcmp.ge.f32.partialorder %v1629, %v380
    %vm2055 = vcmp.ge.f32.partialorder %v1630, %v380
    %vm2056 = vcmp.ge.f32.partialorder %v1631, %v380
    %vm2057 = vcmp.ge.f32.partialorder %v1632, %v380
    %vm2058 = vcmp.ge.f32.partialorder %v1633, %v380
    %vm2059 = vcmp.ge.f32.partialorder %v1634, %v380
    %vm2060 = vcmp.ge.f32.partialorder %v1635, %v380
    %vm2061 = vcmp.ge.f32.partialorder %v1636, %v380
    %vm2062 = vcmp.ge.f32.partialorder %v1638, %v389
    %vm2063 = vcmp.ge.f32.partialorder %v1639, %v389
    %vm2064 = vcmp.ge.f32.partialorder %v1640, %v389
    %vm2065 = vcmp.ge.f32.partialorder %v1641, %v389
    %vm2066 = vcmp.ge.f32.partialorder %v1642, %v389
    %vm2067 = vcmp.ge.f32.partialorder %v1643, %v389
    %vm2068 = vcmp.ge.f32.partialorder %v1644, %v389
    %vm2069 = vcmp.ge.f32.partialorder %v1645, %v389
    %vm2070 = vmand %vm2054, %vm2062
    %vm2071 = vmand %vm2055, %vm2063
    %vm2072 = vmand %vm2056, %vm2064
    %vm2073 = vmand %vm2057, %vm2065
    %vm2074 = vmand %vm2058, %vm2066
    %vm2075 = vmand %vm2059, %vm2067
    %vm2076 = vmand %vm2060, %vm2068
    %vm2077 = vmand %vm2061, %vm2069
    %vm2078 = vcmp.le.f32.partialorder %v1629, %v406
    %vm2079 = vcmp.le.f32.partialorder %v1630, %v406
    %vm2080 = vcmp.le.f32.partialorder %v1631, %v406
    %vm2081 = vcmp.le.f32.partialorder %v1632, %v406
    %vm2082 = vcmp.le.f32.partialorder %v1633, %v406
    %vm2083 = vcmp.le.f32.partialorder %v1634, %v406
    %vm2084 = vcmp.le.f32.partialorder %v1635, %v406
    %vm2085 = vcmp.le.f32.partialorder %v1636, %v406
    %vm2086 = vmand %vm2070, %vm2078
    %vm2087 = vmand %vm2071, %vm2079
    %vm2088 = vmand %vm2072, %vm2080
    %vm2089 = vmand %vm2073, %vm2081
    %vm2090 = vmand %vm2074, %vm2082
    %vm2091 = vmand %vm2075, %vm2083
    %vm2092 = vmand %vm2076, %vm2084
    %vm2093 = vmand %vm2077, %vm2085
    %vm2094 = vcmp.le.f32.partialorder %v1638, %v423
    %vm2095 = vcmp.le.f32.partialorder %v1639, %v423
    %vm2096 = vcmp.le.f32.partialorder %v1640, %v423
    %vm2097 = vcmp.le.f32.partialorder %v1641, %v423
    %vm2098 = vcmp.le.f32.partialorder %v1642, %v423
    %vm2099 = vcmp.le.f32.partialorder %v1643, %v423
    %vm2100 = vcmp.le.f32.partialorder %v1644, %v423
    %vm2101 = vcmp.le.f32.partialorder %v1645, %v423
    %vm2102 = vmand %vm2086, %vm2094
    %vm2103 = vmand %vm2087, %vm2095
    %vm2104 = vmand %vm2088, %vm2096
    %vm2105 = vmand %vm2089, %vm2097
    %vm2106 = vmand %vm2090, %vm2098
    %vm2107 = vmand %vm2091, %vm2099
    %vm2108 = vmand %vm2092, %vm2100
    %vm2109 = vmand %vm2093, %vm2101
    %v2110 = vsel %vm2102, 1, 0
    %v2111 = vsel %vm2103, 1, 0
    %v2112 = vsel %vm2104, 1, 0
    %v2113 = vsel %vm2105, 1, 0
    %v2114 = vsel %vm2106, 1, 0
    %v2115 = vsel %vm2107, 1, 0
    %v2116 = vsel %vm2108, 1, 0
    %v2117 = vsel %vm2109, 1, 0
    %v2118 = vcvt.s32.f32 %v2110
    %v2119 = vcvt.s32.f32 %v2111
    %v2120 = vcvt.s32.f32 %v2112
    %v2121 = vcvt.s32.f32 %v2113
    %v2122 = vcvt.s32.f32 %v2114
    %v2123 = vcvt.s32.f32 %v2115
    %v2124 = vcvt.s32.f32 %v2116
    %v2125 = vcvt.s32.f32 %v2117
    %v2126 = vmul.f32 %v2032, %v2118
    %v2127 = vmul.f32 %v2035, %v2119
    %v2128 = vmul.f32 %v2038, %v2120
    %v2129 = vmul.f32 %v2041, %v2121
    %v2130 = vmul.f32 %v2044, %v2122
    %v2131 = vmul.f32 %v2047, %v2123
    %v2132 = vmul.f32 %v2050, %v2124
    %v2133 = vmul.f32 %v2053, %v2125
    %v2134 = vadd.f32 %v2022, %v2126
    %v2135 = vadd.f32 %v2023, %v2127
    %v2136 = vadd.f32 %v2024, %v2128
    %v2137 = vadd.f32 %v2025, %v2129
    %v2138 = vadd.f32 %v2026, %v2130
    %v2139 = vadd.f32 %v2027, %v2131
    %v2140 = vadd.f32 %v2028, %v2132
    %v2141 = vadd.f32 %v2029, %v2133
    %vm2142 = vcmask 7168
    %v2143 = vsel %vm2142, %v2134, 0.0
    %v2144 = vsel %vm2142, %v2135, 0.0
    %v2145 = vadd.f32 %v2143, %v2144
    %v2146 = vsel %vm2142, %v2136, 0.0
    %v2147 = vadd.f32 %v2145, %v2146
    %v2148 = vsel %vm2142, %v2137, 0.0
    %v2149 = vadd.f32 %v2147, %v2148
    %v2150 = vsel %vm2142, %v2138, 0.0
    %v2151 = vadd.f32 %v2149, %v2150
    %v2152 = vsel %vm2142, %v2139, 0.0
    %v2153 = vadd.f32 %v2151, %v2152
    %v2154 = vsel %vm2142, %v2140, 0.0
    %v2155 = vadd.f32 %v2153, %v2154
    %v2156 = vsel %vm2142, %v2141, 0.0
    %v2157 = vadd.f32 %v2155, %v2156
    %2158 = vadd.xlane.f32.xlu0 %v2157
    %v2159 = vpop.xlane.xlu0 %2158
    %v2160 = vrot.slane %v2159, 4
    %v2161 = vadd.f32 %v2159, %v2160
    %v2162 = vrot.slane %v2161, 2
    %v2163 = vadd.f32 %v2161, %v2162
    %v2164 = vrot.slane %v2163, 1
    %v2165 = vadd.f32 %v2163, %v2164
    %s2166 = vtos %v2165
    %s2167 = smul.f32 %s2166, 0.003968254
    %v2168 = vstv %s2167
    %2169 = vst [vmem:[#allocation5] sm:$0x1] %v2168
    // Predicated region
    $region18: #{mutex_loss_forward.1} parent=1 // pred_check
      _
    $region19: #{mutex_loss_forward.1} parent=1 // pred_check_branch
      %2171 = sbr.rel (0) target = $region21
    $region20: #{mutex_loss_forward.1} parent=1 // pred_region
      %s2173 = ssub.s32 16, 16
      %2174 = vsyncadd [#allocation3], %s2173
      %s2176 = sshll.u32 [#allocation5], 4
      %s2177 = int_to_ptr.vmem [resolvable:$true] %s2176
      %2179 = dma.vmem_to_hbm [thread:$0]  %s2177, 16, %s3, [#allocation3]
    $region21: #{mutex_loss_forward.1} parent=1 // pred_fallthru
      _
    // Predicated region
    $region22: #{mutex_loss_forward.1} parent=1 // pred_check
      _
    $region23: #{mutex_loss_forward.1} parent=1 // pred_check_branch
      %2181 = sbr.rel (0) target = $region25
    $region24: #{mutex_loss_forward.1} parent=1 // pred_region
      %2182 = dma.done [#allocation3], 16
    $region25: #{mutex_loss_forward.1} parent=1 // pred_fallthru
      _
    %2183 = vsyncpa [#allocation3], 1
    %2184 = vsyncpa [#allocation4], 1

</llo_original>
